<compile_context>
chip_gen: v7x
topology: tpu7x:2x2x1
jax: 0.10.0
libtpu: 0.0.40
codegen_flags: <defaults>
</compile_context>

<pallas_src>
import jax
import jax.numpy as jnp
from jax.experimental import pallas as pl
from jax.experimental.pallas import tpu as pltpu


# Logical (PyTorch) dims
D_IN, D_H1, D_H2, D_OUT = 28 * 28, 300, 200, 10
# Lane-padded dims used inside the kernel
P_H1, P_H2, P_OUT = 384, 256, 128
NEG_BIG = -1e30  # bias for padded output columns -> exp() underflows to 0


def _round_up(x, m):
    return (x + m - 1) // m * m


def mnet_kernel(x_ref, w1_ref, b1_ref, w2_ref, b2_ref, w3_ref, b3_ref, out_ref):
    x = x_ref[...]                                              # (TB, 784) bf16

    # Layer 1: 784 -> 384 (=300 padded), sigmoid via tanh (one EUP op / elem)
    h1 = jnp.dot(x, w1_ref[...], preferred_element_type=jnp.float32) + b1_ref[...]
    h1 = 0.5 * (1.0 + jnp.tanh(0.5 * h1))

    # Layer 2: 384 -> 256 (=200 padded), sigmoid
    h2 = jnp.dot(h1.astype(jnp.bfloat16), w2_ref[...],
                 preferred_element_type=jnp.float32) + b2_ref[...]
    h2 = 0.5 * (1.0 + jnp.tanh(0.5 * h2))

    # Final: 256 -> 128 (=10 padded), softmax over the feature axis.
    # Padded columns have zero weights and bias NEG_BIG, so exp() == 0 there and
    # the 128-lane softmax equals the softmax over the real 10 classes.
    logits = jnp.dot(h2.astype(jnp.bfloat16), w3_ref[...],
                     preferred_element_type=jnp.float32) + b3_ref[...]
    m = jnp.max(logits, axis=-1, keepdims=True)
    e = jnp.exp(logits - m)
    out_ref[...] = e * pl.reciprocal(jnp.sum(e, axis=-1, keepdims=True), approx=True)


def _pad_params(params):
    """Zero-pad to lane-aligned shapes and cast weights to bf16."""
    w1, b1, w2, b2, w3, b3 = params
    w1p = jnp.zeros((D_IN, P_H1), jnp.bfloat16).at[:, :D_H1].set(w1.astype(jnp.bfloat16))
    b1p = jnp.zeros((1, P_H1), jnp.float32).at[:, :D_H1].set(b1)
    w2p = jnp.zeros((P_H1, P_H2), jnp.bfloat16).at[:D_H1, :D_H2].set(w2.astype(jnp.bfloat16))
    b2p = jnp.zeros((1, P_H2), jnp.float32).at[:, :D_H2].set(b2)
    w3p = jnp.zeros((P_H2, P_OUT), jnp.bfloat16).at[:D_H2, :D_OUT].set(w3.astype(jnp.bfloat16))
    b3p = jnp.full((1, P_OUT), NEG_BIG, jnp.float32).at[:, :D_OUT].set(b3)
    return w1p, b1p, w2p, b2p, w3p, b3p


def mnet_forward(images, params, *, tb=None):
    """images: (B, 1, 28, 28) float32 NCHW. Returns (B, 10) softmax probs."""
    B = images.shape[0]
    x = images.reshape(B, D_IN).astype(jnp.bfloat16)            # == .view(-1, 784)

    if tb is None:
        tb = min(256, _round_up(B, 8))                          # batch tile
    b_pad = _round_up(B, tb)
    if b_pad != B:
        x = jnp.pad(x, ((0, b_pad - B), (0, 0)))                # padded rows sliced away

    w1p, b1p, w2p, b2p, w3p, b3p = _pad_params(params)
    grid = (b_pad // tb,)

    pinned = lambda shape: pl.BlockSpec(shape, lambda i: (0, 0))  # VMEM-resident

    flops = 2 * b_pad * (D_IN * D_H1 + D_H1 * D_H2 + D_H2 * D_OUT)
    transcendentals = b_pad * (D_H1 + D_H2 + D_OUT)
    bytes_accessed = (b_pad * D_IN * 2 + b_pad * P_OUT * 4
                      + (w1p.size + w2p.size + w3p.size) * 2
                      + (b1p.size + b2p.size + b3p.size) * 4)

    out = pl.pallas_call(
        mnet_kernel,
        out_shape=jax.ShapeDtypeStruct((b_pad, P_OUT), jnp.float32),
        grid_spec=pltpu.PrefetchScalarGridSpec(
            num_scalar_prefetch=0,
            grid=grid,
            in_specs=[
                pl.BlockSpec((tb, D_IN), lambda i: (i, 0)),     # x: batch-tiled
                pinned(w1p.shape), pinned(b1p.shape),
                pinned(w2p.shape), pinned(b2p.shape),
                pinned(w3p.shape), pinned(b3p.shape),
            ],
            out_specs=pl.BlockSpec((tb, P_OUT), lambda i: (i, 0)),
        ),
        compiler_params=pltpu.CompilerParams(
            dimension_semantics=("parallel",),                  # megacore on v7x
        ),
        cost_estimate=pl.CostEstimate(
            flops=flops,
            transcendentals=transcendentals,
            bytes_accessed=bytes_accessed,
        ),
    )(x, w1p, b1p, w2p, b2p, w3p, b3p)

    return out[:B, :D_OUT]


def init_params(key):
    """Deterministic init mimicking nn.Linear's U(-1/sqrt(fan_in), 1/sqrt(fan_in))."""
    ks = jax.random.split(key, 6)

    def linear(kw, kb, fan_in, fan_out):
        bound = 1.0 / jnp.sqrt(float(fan_in))
        # stored as (in, out): transposed vs. PyTorch's (out, in)
        w = jax.random.uniform(kw, (fan_in, fan_out), jnp.float32, -bound, bound)
        b = jax.random.uniform(kb, (1, fan_out), jnp.float32, -bound, bound)
        return w, b

    w1, b1 = linear(ks[0], ks[1], D_IN, D_H1)
    w2, b2 = linear(ks[2], ks[3], D_H1, D_H2)
    w3, b3 = linear(ks[4], ks[5], D_H2, D_OUT)
    return (w1, b1, w2, b2, w3, b3)


def reference_forward(images, params):
    """Pure-JAX f32 reference for correctness checking."""
    w1, b1, w2, b2, w3, b3 = params
    x = images.reshape(images.shape[0], D_IN)
    x = jax.nn.sigmoid(x @ w1 + b1)
    x = jax.nn.sigmoid(x @ w2 + b2)
    return jax.nn.softmax(x @ w3 + b3, axis=1)


if __name__ == "__main__":
    key = jax.random.PRNGKey(0)
    k_img, k_par = jax.random.split(key)

    B = 24                                                     # small demo batch
    images = jax.random.normal(k_img, (B, 1, 28, 28), jnp.float32)   # NCHW
    params = init_params(k_par)

    # tb=8 exercises a multi-step batch grid even at this tiny B.
    out = mnet_forward(images, params, tb=8)
    out = jax.block_until_ready(out)

    ref = jax.block_until_ready(reference_forward(images, params))
    assert out.shape == (B, 10)
    # bf16 matmuls / tanh-sigmoid / approx reciprocal -> loosened tolerance.
    assert jnp.allclose(out, ref, atol=2e-2), "mismatch vs JAX reference"
    assert jnp.allclose(jnp.sum(out, axis=1), 1.0, atol=1e-2), "softmax rows must sum to ~1"

    print("KERNEL_OK")
</pallas_src>

<mosaic_0001>
module attributes {stable_mosaic.version = 11 : i64} {
  func.func @mnet_kernel(%arg0: i32, %arg1: memref<8x784xbf16, #tpu.memory_space<vmem>>, %arg2: memref<784x384xbf16, #tpu.memory_space<vmem>>, %arg3: memref<1x384xf32, #tpu.memory_space<vmem>>, %arg4: memref<384x256xbf16, #tpu.memory_space<vmem>>, %arg5: memref<1x256xf32, #tpu.memory_space<vmem>>, %arg6: memref<256x128xbf16, #tpu.memory_space<vmem>>, %arg7: memref<1x128xf32, #tpu.memory_space<vmem>>, %arg8: memref<8x128xf32, #tpu.memory_space<vmem>>) attributes {dimension_semantics = [#tpu.dimension_semantics<parallel>], iteration_bounds = array<i64: 3>, scalar_prefetch = 0 : i64, scratch_operands = 0 : i64, tpu.core_type = #tpu.core_type<tc>, window_params = [{transform_indices = @transform_0, window_bounds = array<i64: 8, 784>}, {pipeline_mode = #tpu.pipeline_mode<synchronous>, transform_indices = @transform_1, window_bounds = array<i64: 784, 384>}, {pipeline_mode = #tpu.pipeline_mode<synchronous>, transform_indices = @transform_2, window_bounds = array<i64: 1, 384>}, {pipeline_mode = #tpu.pipeline_mode<synchronous>, transform_indices = @transform_3, window_bounds = array<i64: 384, 256>}, {pipeline_mode = #tpu.pipeline_mode<synchronous>, transform_indices = @transform_4, window_bounds = array<i64: 1, 256>}, {pipeline_mode = #tpu.pipeline_mode<synchronous>, transform_indices = @transform_5, window_bounds = array<i64: 256, 128>}, {pipeline_mode = #tpu.pipeline_mode<synchronous>, transform_indices = @transform_6, window_bounds = array<i64: 1, 128>}, {transform_indices = @transform_7, window_bounds = array<i64: 8, 128>}]} {
    %c0 = arith.constant 0 : index
    %c0_0 = arith.constant 0 : index
    %0 = vector.load %arg1[%c0, %c0_0] : memref<8x784xbf16, #tpu.memory_space<vmem>>, vector<8x784xbf16>
    %c0_1 = arith.constant 0 : index
    %c0_2 = arith.constant 0 : index
    %1 = vector.load %arg2[%c0_1, %c0_2] : memref<784x384xbf16, #tpu.memory_space<vmem>>, vector<784x384xbf16>
    %cst = arith.constant dense<0.000000e+00> : vector<8x384xf32>
    %2 = tpu.matmul %0, %1, %cst {dimension_numbers = #tpu.dot_dimension_numbers<[1], [0], [0], [1], [0, 0, 1, 1], [], []>} : vector<8x784xbf16>, vector<784x384xbf16>, vector<8x384xf32> -> vector<8x384xf32>
    %c0_3 = arith.constant 0 : index
    %c0_4 = arith.constant 0 : index
    %3 = vector.load %arg3[%c0_3, %c0_4] : memref<1x384xf32, #tpu.memory_space<vmem>>, vector<1x384xf32>
    %4 = vector.broadcast %3 : vector<1x384xf32> to vector<8x384xf32>
    %5 = arith.addf %2, %4 : vector<8x384xf32>
    %cst_5 = arith.constant 5.000000e-01 : f32
    %6 = vector.broadcast %cst_5 : f32 to vector<8x384xf32>
    %7 = arith.mulf %6, %5 : vector<8x384xf32>
    %8 = math.tanh %7 : vector<8x384xf32>
    %cst_6 = arith.constant 1.000000e+00 : f32
    %9 = vector.broadcast %cst_6 : f32 to vector<8x384xf32>
    %10 = arith.addf %9, %8 : vector<8x384xf32>
    %cst_7 = arith.constant 5.000000e-01 : f32
    %11 = vector.broadcast %cst_7 : f32 to vector<8x384xf32>
    %12 = arith.mulf %11, %10 : vector<8x384xf32>
    %13 = arith.truncf %12 : vector<8x384xf32> to vector<8x384xbf16>
    %c0_8 = arith.constant 0 : index
    %c0_9 = arith.constant 0 : index
    %14 = vector.load %arg4[%c0_8, %c0_9] : memref<384x256xbf16, #tpu.memory_space<vmem>>, vector<384x256xbf16>
    %cst_10 = arith.constant dense<0.000000e+00> : vector<8x256xf32>
    %15 = tpu.matmul %13, %14, %cst_10 {dimension_numbers = #tpu.dot_dimension_numbers<[1], [0], [0], [1], [0, 0, 1, 1], [], []>} : vector<8x384xbf16>, vector<384x256xbf16>, vector<8x256xf32> -> vector<8x256xf32>
    %c0_11 = arith.constant 0 : index
    %c0_12 = arith.constant 0 : index
    %16 = vector.load %arg5[%c0_11, %c0_12] : memref<1x256xf32, #tpu.memory_space<vmem>>, vector<1x256xf32>
    %17 = vector.broadcast %16 : vector<1x256xf32> to vector<8x256xf32>
    %18 = arith.addf %15, %17 : vector<8x256xf32>
    %cst_13 = arith.constant 5.000000e-01 : f32
    %19 = vector.broadcast %cst_13 : f32 to vector<8x256xf32>
    %20 = arith.mulf %19, %18 : vector<8x256xf32>
    %21 = math.tanh %20 : vector<8x256xf32>
    %cst_14 = arith.constant 1.000000e+00 : f32
    %22 = vector.broadcast %cst_14 : f32 to vector<8x256xf32>
    %23 = arith.addf %22, %21 : vector<8x256xf32>
    %cst_15 = arith.constant 5.000000e-01 : f32
    %24 = vector.broadcast %cst_15 : f32 to vector<8x256xf32>
    %25 = arith.mulf %24, %23 : vector<8x256xf32>
    %26 = arith.truncf %25 : vector<8x256xf32> to vector<8x256xbf16>
    %c0_16 = arith.constant 0 : index
    %c0_17 = arith.constant 0 : index
    %27 = vector.load %arg6[%c0_16, %c0_17] : memref<256x128xbf16, #tpu.memory_space<vmem>>, vector<256x128xbf16>
    %cst_18 = arith.constant dense<0.000000e+00> : vector<8x128xf32>
    %28 = tpu.matmul %26, %27, %cst_18 {dimension_numbers = #tpu.dot_dimension_numbers<[1], [0], [0], [1], [0, 0, 1, 1], [], []>} : vector<8x256xbf16>, vector<256x128xbf16>, vector<8x128xf32> -> vector<8x128xf32>
    %c0_19 = arith.constant 0 : index
    %c0_20 = arith.constant 0 : index
    %29 = vector.load %arg7[%c0_19, %c0_20] : memref<1x128xf32, #tpu.memory_space<vmem>>, vector<1x128xf32>
    %30 = vector.broadcast %29 : vector<1x128xf32> to vector<8x128xf32>
    %31 = arith.addf %28, %30 : vector<8x128xf32>
    %cst_21 = arith.constant dense<0xFF800000> : vector<8xf32>
    %32 = vector.multi_reduction <maximumf>, %31, %cst_21 [1] : vector<8x128xf32> to vector<8xf32>
    %33 = vector.shape_cast %32 : vector<8xf32> to vector<8x1xf32>
    %34 = vector.broadcast %33 : vector<8x1xf32> to vector<8x128xf32>
    %35 = arith.subf %31, %34 : vector<8x128xf32>
    %36 = math.exp %35 : vector<8x128xf32>
    %cst_22 = arith.constant dense<0.000000e+00> : vector<8xf32>
    %37 = vector.multi_reduction <add>, %36, %cst_22 [1] : vector<8x128xf32> to vector<8xf32>
    %38 = vector.shape_cast %37 : vector<8xf32> to vector<8x1xf32>
    %39 = tpu.reciprocal %38 {approx = true} : vector<8x1xf32> -> vector<8x1xf32>
    %40 = vector.broadcast %39 : vector<8x1xf32> to vector<8x128xf32>
    %41 = arith.mulf %36, %40 : vector<8x128xf32>
    %c0_23 = arith.constant 0 : index
    %c0_24 = arith.constant 0 : index
    %42 = vector.load %arg8[%c0_23, %c0_24] : memref<8x128xf32, #tpu.memory_space<vmem>>, vector<8x128xf32>
    tpu.vector_store %arg8[%c0_23, %c0_24], %41 {strides = array<i32>} : memref<8x128xf32, #tpu.memory_space<vmem>>, vector<8x128xf32>,
    return
  }
  func.func @transform_0(%arg0: i32) -> (i32, i32) {
    %c0_i32 = arith.constant 0 : i32
    %c0_i32_0 = arith.constant 0 : i32
    return %arg0, %c0_i32 : i32, i32
  }
  func.func @transform_1(%arg0: i32) -> (i32, i32) {
    %c0_i32 = arith.constant 0 : i32
    %c0_i32_0 = arith.constant 0 : i32
    %c0_i32_1 = arith.constant 0 : i32
    return %c0_i32, %c0_i32_0 : i32, i32
  }
  func.func @transform_2(%arg0: i32) -> (i32, i32) {
    %c0_i32 = arith.constant 0 : i32
    %c0_i32_0 = arith.constant 0 : i32
    %c0_i32_1 = arith.constant 0 : i32
    return %c0_i32, %c0_i32_0 : i32, i32
  }
  func.func @transform_3(%arg0: i32) -> (i32, i32) {
    %c0_i32 = arith.constant 0 : i32
    %c0_i32_0 = arith.constant 0 : i32
    %c0_i32_1 = arith.constant 0 : i32
    return %c0_i32, %c0_i32_0 : i32, i32
  }
  func.func @transform_4(%arg0: i32) -> (i32, i32) {
    %c0_i32 = arith.constant 0 : i32
    %c0_i32_0 = arith.constant 0 : i32
    %c0_i32_1 = arith.constant 0 : i32
    return %c0_i32, %c0_i32_0 : i32, i32
  }
  func.func @transform_5(%arg0: i32) -> (i32, i32) {
    %c0_i32 = arith.constant 0 : i32
    %c0_i32_0 = arith.constant 0 : i32
    %c0_i32_1 = arith.constant 0 : i32
    return %c0_i32, %c0_i32_0 : i32, i32
  }
  func.func @transform_6(%arg0: i32) -> (i32, i32) {
    %c0_i32 = arith.constant 0 : i32
    %c0_i32_0 = arith.constant 0 : i32
    %c0_i32_1 = arith.constant 0 : i32
    return %c0_i32, %c0_i32_0 : i32, i32
  }
  func.func @transform_7(%arg0: i32) -> (i32, i32) {
    %c0_i32 = arith.constant 0 : i32
    %c0_i32_0 = arith.constant 0 : i32
    return %arg0, %c0_i32 : i32, i32
  }
}

</mosaic_0001>

<llo_original>
// kernel: tpu_custom_call.1
$region0: #{tpu_custom_call.1}
  #allocation0 [shape = 'u32[]', space=smem, size = 0x4, offset = 0x4, fixed_abs, tag = 'smem constant byte address 0x4 - core index']
  #allocation1 [shape = 'u32[144,128]{1,0:T(1,128)}', space=vmem, size = 0x12000, scoped, tag = 'internal scratch']
  %s0 = inlined_call_operand.hbm [shape: bf16[24,784], index: 0, kind: input, shape index: {}]
  %s1 = inlined_call_operand.hbm [shape: bf16[784,384], index: 1, kind: input, shape index: {}]
  %s2 = inlined_call_operand.vmem [shape: f32[1,384], index: 2, kind: input, shape index: {}]
  %s3 = inlined_call_operand.hbm [shape: bf16[384,256], index: 3, kind: input, shape index: {}]
  %s4 = inlined_call_operand.vmem [shape: f32[1,256], index: 4, kind: input, shape index: {}]
  %s5 = inlined_call_operand.hbm [shape: bf16[256,128], index: 5, kind: input, shape index: {}]
  %s6 = inlined_call_operand.vmem [shape: f32[1,128], index: 6, kind: input, shape index: {}]
  %s7 = inlined_call_operand.hbm [shape: f32[24,128], index: 7, kind: output, shape index: {}]
  %s8 = sld [smem:[#allocation0]]
  $region77: #{tpu_custom_call.1} parent=0
    _
  %s10 = ssub.s32 1, %s8
  %s11 = scalar_select 0, %s10, %s8
  $region1: #{tpu_custom_call.1} parent=0
    #allocation2 [shape = 'u8[28672]{0}', space=vmem, size = 0x7000, scoped, tag = 'input window, operand 0']
    #allocation3 [shape = 's32[2]{0}', space=sflag, size = 0x8, scoped, tag = 'scoped memory for tpu_custom_call.1']
    #allocation4 [shape = 's32[2]{0}', space=sflag, size = 0x8, scoped, tag = 'scoped memory for tpu_custom_call.1']
    #allocation5 [shape = 'u8[602112]{0}', space=vmem, size = 0x93000, scoped, tag = 'input window, operand 1, single buffered']
    #allocation6 [shape = 's32[1]{0}', space=sflag, size = 0x4, scoped, tag = 'scoped memory for tpu_custom_call.1']
    #allocation7 [shape = 'u8[196608]{0}', space=vmem, size = 0x30000, scoped, tag = 'input window, operand 3, single buffered']
    #allocation8 [shape = 'u8[65536]{0}', space=vmem, size = 0x10000, scoped, tag = 'input window, operand 5, single buffered']
    #allocation9 [shape = 's32[1]{0}', space=sflag, size = 0x4, scoped, tag = 'scoped memory for tpu_custom_call.1']
    #allocation10 [shape = 'u8[8192]{0}', space=vmem, size = 0x2000, scoped, tag = 'output window, operand 0']
    %12 = vsyncpa [#allocation3], 0
    %s13 = scalar_lea.sflag [#allocation3], 1
    %14 = vsyncpa %s13, 0
    %15 = vsyncpa [#allocation6], 0
    %16 = vsyncpa [#allocation9], 0
    %17 = vsyncpa [#allocation4], 0
    %s18 = scalar_lea.sflag [#allocation4], 1
    %19 = vsyncpa %s18, 0
    loop: start=0, step=1, limit=5
    $region2: #{tpu_custom_call.1} parent=1 // loop_pre_header
      _
    $region3: #{tpu_custom_call.1} parent=1 // loop_header
      %s21 = sphi 0, %s25
      %p22 = scmp.ge.s32.totalorder %s21, 5
      %s31 = sphi 0, %s33
      %s34 = sphi 0, %s31
      %s35 = sphi 0, %s34
      %s51 = sphi 0, %s35
      %s55 = sphi 0, %s55
      %s57 = sphi 0, %s55
      %s58 = sphi 0, %s57
      %s72 = sphi 0, %s58
      %s76 = sphi 0, %s76
      %s78 = sphi 0, %s76
      %s79 = sphi 0, %s78
      %s93 = sphi 0, %s79
      %s97 = sphi 0, %s97
      %s99 = sphi 0, %s97
      %s100 = sphi 0, %s99
      %s114 = sphi 0, %s100
      %s118 = sphi 0, %s118
      %s120 = sphi 0, %s118
      %s121 = sphi 0, %s120
      %s135 = sphi 0, %s121
      %s139 = sphi 0, %s139
      %s141 = sphi 0, %s139
      %s142 = sphi 0, %s141
      %s156 = sphi 0, %s142
      %s160 = sphi 0, %s160
      %s162 = sphi 0, %s160
      %s163 = sphi 0, %s162
      %s177 = sphi 0, %s163
      %s183 = sphi 0, %s185
      %s186 = sphi 0, %s183
      %s187 = sphi 0, %s186
      %s203 = sphi 0, %s187
    $region4: #{tpu_custom_call.1} parent=1 // loop_header_branch
      %24 = sbr.rel (%p22) target = $region8
    $region5: #{tpu_custom_call.1} parent=1 // loop_body
      %s26 = ssub.s32 %s21, 1
      %s27 = ssub.s32 %s21, 2
      %s28 = sadd.s32 %s21, 1
      %s29 = ssub.s32 %s21, %s28
      %p30 = scmp.eq.s32.totalorder %s29, 0
      %s32 = sadd.s32 %s31, 1
      %s33 = scalar_select %p30, %s31, %s32
      %p36 = pneg %p30
      %p37 = scmp.eq.s32.totalorder %s21, 2
      %p38 = por %p36, %p37
      %p39 = scmp.ne.s32.totalorder %s31, %s34
      %p40 = scmp.eq.s32.totalorder %s21, 0
      %p41 = por %p39, %p40
      %p42 = scmp.ne.s32.totalorder %s31, %s34
      %p43 = scmp.eq.s32.totalorder %s26, 2
      %p44 = por %p42, %p43
      %p45 = scmp.ne.s32.totalorder %s34, %s35
      %p46 = scmp.eq.s32.totalorder %s26, 0
      %p47 = por %p45, %p46
      %p48 = scmp.ne.s32.totalorder %s34, %s35
      %p49 = scmp.eq.s32.totalorder %s27, 2
      %p50 = por %p48, %p49
      %p52 = scmp.ne.s32.totalorder %s35, %s51
      %p53 = scmp.eq.s32.totalorder %s27, 0
      %p54 = por %p52, %p53
      %s56 = sadd.s32 %s55, 1
      %p59 = scmp.eq.s32.totalorder %s21, 2
      %p60 = scmp.ne.s32.totalorder %s55, %s57
      %p61 = scmp.eq.s32.totalorder %s21, 0
      %p62 = por %p60, %p61
      %p63 = scmp.ne.s32.totalorder %s55, %s57
      %p64 = scmp.eq.s32.totalorder %s26, 2
      %p65 = por %p63, %p64
      %p66 = scmp.ne.s32.totalorder %s57, %s58
      %p67 = scmp.eq.s32.totalorder %s26, 0
      %p68 = por %p66, %p67
      %p69 = scmp.ne.s32.totalorder %s57, %s58
      %p70 = scmp.eq.s32.totalorder %s27, 2
      %p71 = por %p69, %p70
      %p73 = scmp.ne.s32.totalorder %s58, %s72
      %p74 = scmp.eq.s32.totalorder %s27, 0
      %p75 = por %p73, %p74
      %s77 = sadd.s32 %s76, 1
      %p80 = scmp.eq.s32.totalorder %s21, 2
      %p81 = scmp.ne.s32.totalorder %s76, %s78
      %p82 = scmp.eq.s32.totalorder %s21, 0
      %p83 = por %p81, %p82
      %p84 = scmp.ne.s32.totalorder %s76, %s78
      %p85 = scmp.eq.s32.totalorder %s26, 2
      %p86 = por %p84, %p85
      %p87 = scmp.ne.s32.totalorder %s78, %s79
      %p88 = scmp.eq.s32.totalorder %s26, 0
      %p89 = por %p87, %p88
      %p90 = scmp.ne.s32.totalorder %s78, %s79
      %p91 = scmp.eq.s32.totalorder %s27, 2
      %p92 = por %p90, %p91
      %p94 = scmp.ne.s32.totalorder %s79, %s93
      %p95 = scmp.eq.s32.totalorder %s27, 0
      %p96 = por %p94, %p95
      %s98 = sadd.s32 %s97, 1
      %p101 = scmp.eq.s32.totalorder %s21, 2
      %p102 = scmp.ne.s32.totalorder %s97, %s99
      %p103 = scmp.eq.s32.totalorder %s21, 0
      %p104 = por %p102, %p103
      %p105 = scmp.ne.s32.totalorder %s97, %s99
      %p106 = scmp.eq.s32.totalorder %s26, 2
      %p107 = por %p105, %p106
      %p108 = scmp.ne.s32.totalorder %s99, %s100
      %p109 = scmp.eq.s32.totalorder %s26, 0
      %p110 = por %p108, %p109
      %p111 = scmp.ne.s32.totalorder %s99, %s100
      %p112 = scmp.eq.s32.totalorder %s27, 2
      %p113 = por %p111, %p112
      %p115 = scmp.ne.s32.totalorder %s100, %s114
      %p116 = scmp.eq.s32.totalorder %s27, 0
      %p117 = por %p115, %p116
      %s119 = sadd.s32 %s118, 1
      %p122 = scmp.eq.s32.totalorder %s21, 2
      %p123 = scmp.ne.s32.totalorder %s118, %s120
      %p124 = scmp.eq.s32.totalorder %s21, 0
      %p125 = por %p123, %p124
      %p126 = scmp.ne.s32.totalorder %s118, %s120
      %p127 = scmp.eq.s32.totalorder %s26, 2
      %p128 = por %p126, %p127
      %p129 = scmp.ne.s32.totalorder %s120, %s121
      %p130 = scmp.eq.s32.totalorder %s26, 0
      %p131 = por %p129, %p130
      %p132 = scmp.ne.s32.totalorder %s120, %s121
      %p133 = scmp.eq.s32.totalorder %s27, 2
      %p134 = por %p132, %p133
      %p136 = scmp.ne.s32.totalorder %s121, %s135
      %p137 = scmp.eq.s32.totalorder %s27, 0
      %p138 = por %p136, %p137
      %s140 = sadd.s32 %s139, 1
      %p143 = scmp.eq.s32.totalorder %s21, 2
      %p144 = scmp.ne.s32.totalorder %s139, %s141
      %p145 = scmp.eq.s32.totalorder %s21, 0
      %p146 = por %p144, %p145
      %p147 = scmp.ne.s32.totalorder %s139, %s141
      %p148 = scmp.eq.s32.totalorder %s26, 2
      %p149 = por %p147, %p148
      %p150 = scmp.ne.s32.totalorder %s141, %s142
      %p151 = scmp.eq.s32.totalorder %s26, 0
      %p152 = por %p150, %p151
      %p153 = scmp.ne.s32.totalorder %s141, %s142
      %p154 = scmp.eq.s32.totalorder %s27, 2
      %p155 = por %p153, %p154
      %p157 = scmp.ne.s32.totalorder %s142, %s156
      %p158 = scmp.eq.s32.totalorder %s27, 0
      %p159 = por %p157, %p158
      %s161 = sadd.s32 %s160, 1
      %p164 = scmp.eq.s32.totalorder %s21, 2
      %p165 = scmp.ne.s32.totalorder %s160, %s162
      %p166 = scmp.eq.s32.totalorder %s21, 0
      %p167 = por %p165, %p166
      %p168 = scmp.ne.s32.totalorder %s160, %s162
      %p169 = scmp.eq.s32.totalorder %s26, 2
      %p170 = por %p168, %p169
      %p171 = scmp.ne.s32.totalorder %s162, %s163
      %p172 = scmp.eq.s32.totalorder %s26, 0
      %p173 = por %p171, %p172
      %p174 = scmp.ne.s32.totalorder %s162, %s163
      %p175 = scmp.eq.s32.totalorder %s27, 2
      %p176 = por %p174, %p175
      %p178 = scmp.ne.s32.totalorder %s163, %s177
      %p179 = scmp.eq.s32.totalorder %s27, 0
      %p180 = por %p178, %p179
      %s181 = ssub.s32 %s21, %s28
      %p182 = scmp.eq.s32.totalorder %s181, 0
      %s184 = sadd.s32 %s183, 1
      %s185 = scalar_select %p182, %s183, %s184
      %p188 = pneg %p182
      %p189 = scmp.eq.s32.totalorder %s21, 2
      %p190 = por %p188, %p189
      %p191 = scmp.ne.s32.totalorder %s183, %s186
      %p192 = scmp.eq.s32.totalorder %s21, 0
      %p193 = por %p191, %p192
      %p194 = scmp.ne.s32.totalorder %s183, %s186
      %p195 = scmp.eq.s32.totalorder %s26, 2
      %p196 = por %p194, %p195
      %p197 = scmp.ne.s32.totalorder %s186, %s187
      %p198 = scmp.eq.s32.totalorder %s26, 0
      %p199 = por %p197, %p198
      %p200 = scmp.ne.s32.totalorder %s186, %s187
      %p201 = scmp.eq.s32.totalorder %s27, 2
      %p202 = por %p200, %p201
      %p204 = scmp.ne.s32.totalorder %s187, %s203
      %p205 = scmp.eq.s32.totalorder %s27, 0
      %p206 = por %p204, %p205
      %p207 = scmp.le.s32.totalorder 1, %s21
      %p208 = scmp.lt.s32.totalorder %s21, 4
      %p209 = pnand %p207, %p208
      %p210 = pneg %p209
      // Predicated region
      $region9: #{tpu_custom_call.1} parent=5 // pred_check
        _
      $region10: #{tpu_custom_call.1} parent=5 // pred_check_branch
        %212 = sbr.rel (%p209) target = $region12
      $region11: #{tpu_custom_call.1} parent=5 // pred_region
        %s213 = ssub.s32 %s21, 1
        // Predicated region
        $region13: #{tpu_custom_call.1} parent=11 // pred_check
          %p214 = pneg %p68
        $region14: #{tpu_custom_call.1} parent=11 // pred_check_branch
          %216 = sbr.rel (%p214) target = $region16
        $region15: #{tpu_custom_call.1} parent=11 // pred_region
          %s218 = ssub.s32 18816, 18816
          %219 = vsyncadd [#allocation6], %s218
          %s220 = sshll.u32 [#allocation5], 4
          %s221 = int_to_ptr.vmem [resolvable:$true] %s220
          %226 = dma.hbm_to_vmem [thread:$0]  %s1, 18816, %s221, [#allocation6], 192, 192, 12
        $region16: #{tpu_custom_call.1} parent=11 // pred_fallthru
          _
        // Predicated region
        $region17: #{tpu_custom_call.1} parent=11 // pred_check
          %p227 = pneg %p89
        $region18: #{tpu_custom_call.1} parent=11 // pred_check_branch
          %229 = sbr.rel (%p227) target = $region20
        $region19: #{tpu_custom_call.1} parent=11 // pred_region
          _
        $region20: #{tpu_custom_call.1} parent=11 // pred_fallthru
          _
        // Predicated region
        $region21: #{tpu_custom_call.1} parent=11 // pred_check
          %p230 = pneg %p110
        $region22: #{tpu_custom_call.1} parent=11 // pred_check_branch
          %232 = sbr.rel (%p230) target = $region24
        $region23: #{tpu_custom_call.1} parent=11 // pred_region
          %s234 = ssub.s32 6144, 6144
          %235 = vsyncadd [#allocation6], %s234
          %s236 = sshll.u32 [#allocation7], 4
          %s237 = int_to_ptr.vmem [resolvable:$true] %s236
          %242 = dma.hbm_to_vmem [thread:$0]  %s3, 6144, %s237, [#allocation6], 128, 128, 8
        $region24: #{tpu_custom_call.1} parent=11 // pred_fallthru
          _
        // Predicated region
        $region25: #{tpu_custom_call.1} parent=11 // pred_check
          %p243 = pneg %p131
        $region26: #{tpu_custom_call.1} parent=11 // pred_check_branch
          %245 = sbr.rel (%p243) target = $region28
        $region27: #{tpu_custom_call.1} parent=11 // pred_region
          _
        $region28: #{tpu_custom_call.1} parent=11 // pred_fallthru
          _
        // Predicated region
        $region29: #{tpu_custom_call.1} parent=11 // pred_check
          %p246 = pneg %p152
        $region30: #{tpu_custom_call.1} parent=11 // pred_check_branch
          %248 = sbr.rel (%p246) target = $region32
        $region31: #{tpu_custom_call.1} parent=11 // pred_region
          %s250 = ssub.s32 2048, 2048
          %251 = vsyncadd [#allocation9], %s250
          %s252 = sshll.u32 [#allocation8], 4
          %s253 = int_to_ptr.vmem [resolvable:$true] %s252
          %258 = dma.hbm_to_vmem [thread:$0]  %s5, 2048, %s253, [#allocation9], 64, 64, 4
        $region32: #{tpu_custom_call.1} parent=11 // pred_fallthru
          _
        // Predicated region
        $region33: #{tpu_custom_call.1} parent=11 // pred_check
          %p259 = pneg %p173
        $region34: #{tpu_custom_call.1} parent=11 // pred_check_branch
          %261 = sbr.rel (%p259) target = $region36
        $region35: #{tpu_custom_call.1} parent=11 // pred_region
          _
        $region36: #{tpu_custom_call.1} parent=11 // pred_fallthru
          _
      $region12: #{tpu_custom_call.1} parent=5 // pred_fallthru
        _
      %p262 = scmp.lt.s32.totalorder %s21, 3
      // Predicated region
      $region37: #{tpu_custom_call.1} parent=5 // pred_check
        %p263 = pneg %p262
      $region38: #{tpu_custom_call.1} parent=5 // pred_check_branch
        %265 = sbr.rel (%p263) target = $region40
      $region39: #{tpu_custom_call.1} parent=5 // pred_region
        // Predicated region
        $region41: #{tpu_custom_call.1} parent=39 // pred_check
          %p266 = pneg %p41
        $region42: #{tpu_custom_call.1} parent=39 // pred_check_branch
          %268 = sbr.rel (%p266) target = $region44
        $region43: #{tpu_custom_call.1} parent=39 // pred_region
          %s269 = sand.u32 %s31, 1
          %s270 = scalar_lea.sflag [#allocation3], %s269
          %s271 = sand.u32 %s31, 1
          %s272 = smul.addr %s271, 28
          %s273 = scalar_lea.vmem [#allocation2], %s272
          %s275 = ssub.s32 448, 448
          %276 = vsyncadd %s270, %s275
          %s277 = smul.addr %s21, 7
          %s278 = smul.addr %s277, 64
          %s279 = scalar_lea.hbm %s0, %s278
          %s281 = sshll.u32 %s273, 4
          %s282 = int_to_ptr.vmem [resolvable:$true] %s281
          %284 = dma.hbm_to_vmem [thread:$0]  %s279, 448, %s282, %s270
        $region44: #{tpu_custom_call.1} parent=39 // pred_fallthru
          _
      $region40: #{tpu_custom_call.1} parent=5 // pred_fallthru
        _
      %p285 = scmp.le.s32.totalorder 1, %s21
      %p286 = scmp.lt.s32.totalorder %s21, 4
      %p287 = pnand %p285, %p286
      %p288 = pneg %p287
      // Predicated region
      $region45: #{tpu_custom_call.1} parent=5 // pred_check
        _
      $region46: #{tpu_custom_call.1} parent=5 // pred_check_branch
        %290 = sbr.rel (%p287) target = $region48
      $region47: #{tpu_custom_call.1} parent=5 // pred_region
        %s291 = ssub.s32 %s21, 1
        %s292 = sand.u32 %s34, 1
        %s293 = scalar_lea.sflag [#allocation3], %s292
        %s294 = sand.u32 %s34, 1
        %s295 = smul.addr %s294, 28
        %s296 = scalar_lea.vmem [#allocation2], %s295
        // Predicated region
        $region49: #{tpu_custom_call.1} parent=47 // pred_check
          %p297 = pneg %p47
        $region50: #{tpu_custom_call.1} parent=47 // pred_check_branch
          %299 = sbr.rel (%p297) target = $region52
        $region51: #{tpu_custom_call.1} parent=47 // pred_region
          %300 = dma.done %s293, 448
        $region52: #{tpu_custom_call.1} parent=47 // pred_fallthru
          _
        // Predicated region
        $region53: #{tpu_custom_call.1} parent=47 // pred_check
          %p301 = pneg %p68
        $region54: #{tpu_custom_call.1} parent=47 // pred_check_branch
          %303 = sbr.rel (%p301) target = $region56
        $region55: #{tpu_custom_call.1} parent=47 // pred_region
          %304 = dma.done [#allocation6], 18816
        $region56: #{tpu_custom_call.1} parent=47 // pred_fallthru
          _
        // Predicated region
        $region57: #{tpu_custom_call.1} parent=47 // pred_check
          %p305 = pneg %p110
        $region58: #{tpu_custom_call.1} parent=47 // pred_check_branch
          %307 = sbr.rel (%p305) target = $region60
        $region59: #{tpu_custom_call.1} parent=47 // pred_region
          %308 = dma.done [#allocation6], 6144
        $region60: #{tpu_custom_call.1} parent=47 // pred_fallthru
          _
        // Predicated region
        $region61: #{tpu_custom_call.1} parent=47 // pred_check
          %p309 = pneg %p152
        $region62: #{tpu_custom_call.1} parent=47 // pred_check_branch
          %311 = sbr.rel (%p309) target = $region64
        $region63: #{tpu_custom_call.1} parent=47 // pred_region
          %312 = dma.done [#allocation9], 2048
        $region64: #{tpu_custom_call.1} parent=47 // pred_fallthru
          _
        %s313 = sand.u32 %s34, 1
        %s314 = scalar_lea.sflag [#allocation3], %s313
        %s315 = sand.u32 %s34, 1
        %s316 = smul.addr %s315, 28
        %s317 = scalar_lea.vmem [#allocation2], %s316
        %p318 = pneg %p47
        %p319 = pneg %p44
        %p320 = pneg %p68
        %p321 = pneg %p65
        %p322 = pneg %p89
        %p323 = pneg %p86
        %p324 = pneg %p110
        %p325 = pneg %p107
        %p326 = pneg %p131
        %p327 = pneg %p128
        %p328 = pneg %p152
        %p329 = pneg %p149
        %p330 = pneg %p173
        %p331 = pneg %p170
        %p332 = pneg %p199
        %p333 = pneg %p196
        %s334 = sand.u32 %s186, 1
        %s335 = scalar_lea.sflag [#allocation4], %s334
        %s336 = sand.u32 %s186, 1
        %s337 = smul.addr %s336, 8
        %s338 = scalar_lea.vmem [#allocation10], %s337
        %v340 = vld [vmem:[%s296] sm:$0xff]
        %v341 = vld [vmem:[%s296 + $0x8] sm:$0xff]
        %v342 = vld [vmem:[%s296 + $0x10] sm:$0xff]
        %v343 = vld [vmem:[%s296 + $0x18] sm:$0xf]
        %v344 = vld [vmem:[#allocation5] sm:$0xff]
        %v345 = vld [vmem:[#allocation5 + $0x8] sm:$0xf]
        %v346 = vld [vmem:[#allocation5 + $0xc] sm:$0xff]
        %v347 = vld [vmem:[#allocation5 + $0x14] sm:$0xf]
        %v348 = vld [vmem:[#allocation5 + $0x18] sm:$0xff]
        %v349 = vld [vmem:[#allocation5 + $0x20] sm:$0xf]
        %v350 = vld [vmem:[#allocation5 + $0x24] sm:$0xff]
        %v351 = vld [vmem:[#allocation5 + $0x2c] sm:$0xf]
        %v352 = vld [vmem:[#allocation5 + $0x30] sm:$0xff]
        %v353 = vld [vmem:[#allocation5 + $0x38] sm:$0xf]
        %v354 = vld [vmem:[#allocation5 + $0x3c] sm:$0xff]
        %v355 = vld [vmem:[#allocation5 + $0x44] sm:$0xf]
        %v356 = vld [vmem:[#allocation5 + $0x48] sm:$0xff]
        %v357 = vld [vmem:[#allocation5 + $0x50] sm:$0xf]
        %v358 = vld [vmem:[#allocation5 + $0x54] sm:$0xff]
        %v359 = vld [vmem:[#allocation5 + $0x5c] sm:$0xf]
        %v360 = vld [vmem:[#allocation5 + $0x60] sm:$0xff]
        %v361 = vld [vmem:[#allocation5 + $0x68] sm:$0xf]
        %v362 = vld [vmem:[#allocation5 + $0x6c] sm:$0xff]
        %v363 = vld [vmem:[#allocation5 + $0x74] sm:$0xf]
        %v364 = vld [vmem:[#allocation5 + $0x78] sm:$0xff]
        %v365 = vld [vmem:[#allocation5 + $0x80] sm:$0xf]
        %v366 = vld [vmem:[#allocation5 + $0x84] sm:$0xff]
        %v367 = vld [vmem:[#allocation5 + $0x8c] sm:$0xf]
        %v368 = vld [vmem:[#allocation5 + $0x90] sm:$0xff]
        %v369 = vld [vmem:[#allocation5 + $0x98] sm:$0xf]
        %v370 = vld [vmem:[#allocation5 + $0x9c] sm:$0xff]
        %v371 = vld [vmem:[#allocation5 + $0xa4] sm:$0xf]
        %v372 = vld [vmem:[#allocation5 + $0xa8] sm:$0xff]
        %v373 = vld [vmem:[#allocation5 + $0xb0] sm:$0xf]
        %v374 = vld [vmem:[#allocation5 + $0xb4] sm:$0xff]
        %v375 = vld [vmem:[#allocation5 + $0xbc] sm:$0xf]
        %v376 = vld [vmem:[#allocation5 + $0xc0] sm:$0xff]
        %v377 = vld [vmem:[#allocation5 + $0xc8] sm:$0xf]
        %v378 = vld [vmem:[#allocation5 + $0xcc] sm:$0xff]
        %v379 = vld [vmem:[#allocation5 + $0xd4] sm:$0xf]
        %v380 = vld [vmem:[#allocation5 + $0xd8] sm:$0xff]
        %v381 = vld [vmem:[#allocation5 + $0xe0] sm:$0xf]
        %v382 = vld [vmem:[#allocation5 + $0xe4] sm:$0xff]
        %v383 = vld [vmem:[#allocation5 + $0xec] sm:$0xf]
        %v384 = vld [vmem:[#allocation5 + $0xf0] sm:$0xff]
        %v385 = vld [vmem:[#allocation5 + $0xf8] sm:$0xf]
        %v386 = vld [vmem:[#allocation5 + $0xfc] sm:$0xff]
        %v387 = vld [vmem:[#allocation5 + $0x104] sm:$0xf]
        %v388 = vld [vmem:[#allocation5 + $0x108] sm:$0xff]
        %v389 = vld [vmem:[#allocation5 + $0x110] sm:$0xf]
        %v390 = vld [vmem:[#allocation5 + $0x114] sm:$0xff]
        %v391 = vld [vmem:[#allocation5 + $0x11c] sm:$0xf]
        %v392 = vld [vmem:[#allocation5 + $0x120] sm:$0xff]
        %v393 = vld [vmem:[#allocation5 + $0x128] sm:$0xf]
        %v394 = vld [vmem:[#allocation5 + $0x12c] sm:$0xff]
        %v395 = vld [vmem:[#allocation5 + $0x134] sm:$0xf]
        %v396 = vld [vmem:[#allocation5 + $0x138] sm:$0xff]
        %v397 = vld [vmem:[#allocation5 + $0x140] sm:$0xf]
        %v398 = vld [vmem:[#allocation5 + $0x144] sm:$0xff]
        %v399 = vld [vmem:[#allocation5 + $0x14c] sm:$0xf]
        %v400 = vld [vmem:[#allocation5 + $0x150] sm:$0xff]
        %v401 = vld [vmem:[#allocation5 + $0x158] sm:$0xf]
        %v402 = vld [vmem:[#allocation5 + $0x15c] sm:$0xff]
        %v403 = vld [vmem:[#allocation5 + $0x164] sm:$0xf]
        %v404 = vld [vmem:[#allocation5 + $0x168] sm:$0xff]
        %v405 = vld [vmem:[#allocation5 + $0x170] sm:$0xf]
        %v406 = vld [vmem:[#allocation5 + $0x174] sm:$0xff]
        %v407 = vld [vmem:[#allocation5 + $0x17c] sm:$0xf]
        %v408 = vld [vmem:[#allocation5 + $0x180] sm:$0xff]
        %v409 = vld [vmem:[#allocation5 + $0x188] sm:$0xf]
        %v410 = vld [vmem:[#allocation5 + $0x18c] sm:$0xff]
        %v411 = vld [vmem:[#allocation5 + $0x194] sm:$0xf]
        %v412 = vld [vmem:[#allocation5 + $0x198] sm:$0xff]
        %v413 = vld [vmem:[#allocation5 + $0x1a0] sm:$0xf]
        %v414 = vld [vmem:[#allocation5 + $0x1a4] sm:$0xff]
        %v415 = vld [vmem:[#allocation5 + $0x1ac] sm:$0xf]
        %v416 = vld [vmem:[#allocation5 + $0x1b0] sm:$0xff]
        %v417 = vld [vmem:[#allocation5 + $0x1b8] sm:$0xf]
        %v418 = vld [vmem:[#allocation5 + $0x1bc] sm:$0xff]
        %v419 = vld [vmem:[#allocation5 + $0x1c4] sm:$0xf]
        %v420 = vld [vmem:[#allocation5 + $0x1c8] sm:$0xff]
        %v421 = vld [vmem:[#allocation5 + $0x1d0] sm:$0xf]
        %v422 = vld [vmem:[#allocation5 + $0x1d4] sm:$0xff]
        %v423 = vld [vmem:[#allocation5 + $0x1dc] sm:$0xf]
        %v424 = vld [vmem:[#allocation5 + $0x1e0] sm:$0xff]
        %v425 = vld [vmem:[#allocation5 + $0x1e8] sm:$0xf]
        %v426 = vld [vmem:[#allocation5 + $0x1ec] sm:$0xff]
        %v427 = vld [vmem:[#allocation5 + $0x1f4] sm:$0xf]
        %v428 = vld [vmem:[#allocation5 + $0x1f8] sm:$0xff]
        %v429 = vld [vmem:[#allocation5 + $0x200] sm:$0xf]
        %v430 = vld [vmem:[#allocation5 + $0x204] sm:$0xff]
        %v431 = vld [vmem:[#allocation5 + $0x20c] sm:$0xf]
        %v432 = vld [vmem:[#allocation5 + $0x210] sm:$0xff]
        %v433 = vld [vmem:[#allocation5 + $0x218] sm:$0xf]
        %v434 = vld [vmem:[#allocation5 + $0x21c] sm:$0xff]
        %v435 = vld [vmem:[#allocation5 + $0x224] sm:$0xf]
        %v436 = vld [vmem:[#allocation5 + $0x228] sm:$0xff]
        %v437 = vld [vmem:[#allocation5 + $0x230] sm:$0xf]
        %v438 = vld [vmem:[#allocation5 + $0x234] sm:$0xff]
        %v439 = vld [vmem:[#allocation5 + $0x23c] sm:$0xf]
        %v440 = vld [vmem:[#allocation5 + $0x240] sm:$0xff]
        %v441 = vld [vmem:[#allocation5 + $0x248] sm:$0xf]
        %v442 = vld [vmem:[#allocation5 + $0x24c] sm:$0xff]
        %v443 = vld [vmem:[#allocation5 + $0x254] sm:$0xf]
        %v444 = vld [vmem:[#allocation5 + $0x258] sm:$0xff]
        %v445 = vld [vmem:[#allocation5 + $0x260] sm:$0xf]
        %v446 = vld [vmem:[#allocation5 + $0x264] sm:$0xff]
        %v447 = vld [vmem:[#allocation5 + $0x26c] sm:$0xf]
        %v448 = vld [vmem:[#allocation5 + $0x270] sm:$0xff]
        %v449 = vld [vmem:[#allocation5 + $0x278] sm:$0xf]
        %v450 = vld [vmem:[#allocation5 + $0x27c] sm:$0xff]
        %v451 = vld [vmem:[#allocation5 + $0x284] sm:$0xf]
        %v452 = vld [vmem:[#allocation5 + $0x288] sm:$0xff]
        %v453 = vld [vmem:[#allocation5 + $0x290] sm:$0xf]
        %v454 = vld [vmem:[#allocation5 + $0x294] sm:$0xff]
        %v455 = vld [vmem:[#allocation5 + $0x29c] sm:$0xf]
        %v456 = vld [vmem:[#allocation5 + $0x2a0] sm:$0xff]
        %v457 = vld [vmem:[#allocation5 + $0x2a8] sm:$0xf]
        %v458 = vld [vmem:[#allocation5 + $0x2ac] sm:$0xff]
        %v459 = vld [vmem:[#allocation5 + $0x2b4] sm:$0xf]
        %v460 = vld [vmem:[#allocation5 + $0x2b8] sm:$0xff]
        %v461 = vld [vmem:[#allocation5 + $0x2c0] sm:$0xf]
        %v462 = vld [vmem:[#allocation5 + $0x2c4] sm:$0xff]
        %v463 = vld [vmem:[#allocation5 + $0x2cc] sm:$0xf]
        %v464 = vld [vmem:[#allocation5 + $0x2d0] sm:$0xff]
        %v465 = vld [vmem:[#allocation5 + $0x2d8] sm:$0xf]
        %v466 = vld [vmem:[#allocation5 + $0x2dc] sm:$0xff]
        %v467 = vld [vmem:[#allocation5 + $0x2e4] sm:$0xf]
        %v468 = vld [vmem:[#allocation5 + $0x2e8] sm:$0xff]
        %v469 = vld [vmem:[#allocation5 + $0x2f0] sm:$0xf]
        %v470 = vld [vmem:[#allocation5 + $0x2f4] sm:$0xff]
        %v471 = vld [vmem:[#allocation5 + $0x2fc] sm:$0xf]
        %v472 = vld [vmem:[#allocation5 + $0x300] sm:$0xff]
        %v473 = vld [vmem:[#allocation5 + $0x308] sm:$0xf]
        %v474 = vld [vmem:[#allocation5 + $0x30c] sm:$0xff]
        %v475 = vld [vmem:[#allocation5 + $0x314] sm:$0xf]
        %v476 = vld [vmem:[#allocation5 + $0x318] sm:$0xff]
        %v477 = vld [vmem:[#allocation5 + $0x320] sm:$0xf]
        %v478 = vld [vmem:[#allocation5 + $0x324] sm:$0xff]
        %v479 = vld [vmem:[#allocation5 + $0x32c] sm:$0xf]
        %v480 = vld [vmem:[#allocation5 + $0x330] sm:$0xff]
        %v481 = vld [vmem:[#allocation5 + $0x338] sm:$0xf]
        %v482 = vld [vmem:[#allocation5 + $0x33c] sm:$0xff]
        %v483 = vld [vmem:[#allocation5 + $0x344] sm:$0xf]
        %v484 = vld [vmem:[#allocation5 + $0x348] sm:$0xff]
        %v485 = vld [vmem:[#allocation5 + $0x350] sm:$0xf]
        %v486 = vld [vmem:[#allocation5 + $0x354] sm:$0xff]
        %v487 = vld [vmem:[#allocation5 + $0x35c] sm:$0xf]
        %v488 = vld [vmem:[#allocation5 + $0x360] sm:$0xff]
        %v489 = vld [vmem:[#allocation5 + $0x368] sm:$0xf]
        %v490 = vld [vmem:[#allocation5 + $0x36c] sm:$0xff]
        %v491 = vld [vmem:[#allocation5 + $0x374] sm:$0xf]
        %v492 = vld [vmem:[#allocation5 + $0x378] sm:$0xff]
        %v493 = vld [vmem:[#allocation5 + $0x380] sm:$0xf]
        %v494 = vld [vmem:[#allocation5 + $0x384] sm:$0xff]
        %v495 = vld [vmem:[#allocation5 + $0x38c] sm:$0xf]
        %v496 = vld [vmem:[#allocation5 + $0x390] sm:$0xff]
        %v497 = vld [vmem:[#allocation5 + $0x398] sm:$0xf]
        %v498 = vld [vmem:[#allocation5 + $0x39c] sm:$0xff]
        %v499 = vld [vmem:[#allocation5 + $0x3a4] sm:$0xf]
        %v500 = vld [vmem:[#allocation5 + $0x3a8] sm:$0xff]
        %v501 = vld [vmem:[#allocation5 + $0x3b0] sm:$0xf]
        %v502 = vld [vmem:[#allocation5 + $0x3b4] sm:$0xff]
        %v503 = vld [vmem:[#allocation5 + $0x3bc] sm:$0xf]
        %v504 = vld [vmem:[#allocation5 + $0x3c0] sm:$0xff]
        %v505 = vld [vmem:[#allocation5 + $0x3c8] sm:$0xf]
        %v506 = vld [vmem:[#allocation5 + $0x3cc] sm:$0xff]
        %v507 = vld [vmem:[#allocation5 + $0x3d4] sm:$0xf]
        %v508 = vld [vmem:[#allocation5 + $0x3d8] sm:$0xff]
        %v509 = vld [vmem:[#allocation5 + $0x3e0] sm:$0xf]
        %v510 = vld [vmem:[#allocation5 + $0x3e4] sm:$0xff]
        %v511 = vld [vmem:[#allocation5 + $0x3ec] sm:$0xf]
        %v512 = vld [vmem:[#allocation5 + $0x3f0] sm:$0xff]
        %v513 = vld [vmem:[#allocation5 + $0x3f8] sm:$0xf]
        %v514 = vld [vmem:[#allocation5 + $0x3fc] sm:$0xff]
        %v515 = vld [vmem:[#allocation5 + $0x404] sm:$0xf]
        %v516 = vld [vmem:[#allocation5 + $0x408] sm:$0xff]
        %v517 = vld [vmem:[#allocation5 + $0x410] sm:$0xf]
        %v518 = vld [vmem:[#allocation5 + $0x414] sm:$0xff]
        %v519 = vld [vmem:[#allocation5 + $0x41c] sm:$0xf]
        %v520 = vld [vmem:[#allocation5 + $0x420] sm:$0xff]
        %v521 = vld [vmem:[#allocation5 + $0x428] sm:$0xf]
        %v522 = vld [vmem:[#allocation5 + $0x42c] sm:$0xff]
        %v523 = vld [vmem:[#allocation5 + $0x434] sm:$0xf]
        %v524 = vld [vmem:[#allocation5 + $0x438] sm:$0xff]
        %v525 = vld [vmem:[#allocation5 + $0x440] sm:$0xf]
        %v526 = vld [vmem:[#allocation5 + $0x444] sm:$0xff]
        %v527 = vld [vmem:[#allocation5 + $0x44c] sm:$0xf]
        %v528 = vld [vmem:[#allocation5 + $0x450] sm:$0xff]
        %v529 = vld [vmem:[#allocation5 + $0x458] sm:$0xf]
        %v530 = vld [vmem:[#allocation5 + $0x45c] sm:$0xff]
        %v531 = vld [vmem:[#allocation5 + $0x464] sm:$0xf]
        %v532 = vld [vmem:[#allocation5 + $0x468] sm:$0xff]
        %v533 = vld [vmem:[#allocation5 + $0x470] sm:$0xf]
        %v534 = vld [vmem:[#allocation5 + $0x474] sm:$0xff]
        %v535 = vld [vmem:[#allocation5 + $0x47c] sm:$0xf]
        %v536 = vld [vmem:[#allocation5 + $0x480] sm:$0xff]
        %v537 = vld [vmem:[#allocation5 + $0x488] sm:$0xf]
        %v538 = vld [vmem:[#allocation5 + $0x48c] sm:$0xff]
        %v539 = vld [vmem:[#allocation5 + $0x494] sm:$0xf]
        %v540 = vld [vmem:[%s2] sm:$0x7]
        %v542 = vlaneseq
        %v543 = vshrl.u32 %v542, 7
        %v544 = vsub.s32 0, %v543
        %v545 = vrot.slane %v540, %v544
        %v546 = vlaneseq
        %v547 = vshrl.u32 %v546, 7
        %v548 = vsub.s32 1, %v547
        %v549 = vrot.slane %v540, %v548
        %v550 = vlaneseq
        %v551 = vshrl.u32 %v550, 7
        %v552 = vsub.s32 2, %v551
        %v553 = vrot.slane %v540, %v552
        %v561 = vunpack.c.l.b16 %v340
        %v562 = vunpack.c.h.b16 %v340
        %v563 = vunpack.c.l.b16 %v341
        %v564 = vunpack.c.h.b16 %v341
        %v565 = vunpack.c.l.b16 %v342
        %v566 = vunpack.c.h.b16 %v342
        %v567 = vunpack.c.l.b16 %v343
        %v568 = vpack.c.b16 %v561, %v561
        %v569 = vpack.c.b16 %v562, %v562
        %v570 = vpack.c.b16 %v563, %v563
        %v571 = vpack.c.b16 %v564, %v564
        %v572 = vpack.c.b16 %v565, %v565
        %v573 = vpack.c.b16 %v566, %v566
        %v574 = vpack.c.b16 %v567, %v567
        %v777 = vunpack.c.l.b16 %v344
        %v778 = vunpack.c.h.b16 %v344
        %v779 = vunpack.c.l.b16 %v345
        %v780 = vunpack.c.l.b16 %v346
        %v781 = vunpack.c.h.b16 %v346
        %v782 = vunpack.c.l.b16 %v347
        %v783 = vunpack.c.l.b16 %v348
        %v784 = vunpack.c.h.b16 %v348
        %v785 = vunpack.c.l.b16 %v349
        %v786 = vunpack.c.l.b16 %v350
        %v787 = vunpack.c.h.b16 %v350
        %v788 = vunpack.c.l.b16 %v351
        %v789 = vunpack.c.l.b16 %v352
        %v790 = vunpack.c.h.b16 %v352
        %v791 = vunpack.c.l.b16 %v353
        %v792 = vunpack.c.l.b16 %v354
        %v793 = vunpack.c.h.b16 %v354
        %v794 = vunpack.c.l.b16 %v355
        %v795 = vunpack.c.l.b16 %v356
        %v796 = vunpack.c.h.b16 %v356
        %v797 = vunpack.c.l.b16 %v357
        %v798 = vunpack.c.l.b16 %v358
        %v799 = vunpack.c.h.b16 %v358
        %v800 = vunpack.c.l.b16 %v359
        %v801 = vunpack.c.l.b16 %v360
        %v802 = vunpack.c.h.b16 %v360
        %v803 = vunpack.c.l.b16 %v361
        %v804 = vunpack.c.l.b16 %v362
        %v805 = vunpack.c.h.b16 %v362
        %v806 = vunpack.c.l.b16 %v363
        %v807 = vunpack.c.l.b16 %v364
        %v808 = vunpack.c.h.b16 %v364
        %v809 = vunpack.c.l.b16 %v365
        %v810 = vunpack.c.l.b16 %v366
        %v811 = vunpack.c.h.b16 %v366
        %v812 = vunpack.c.l.b16 %v367
        %v813 = vunpack.c.l.b16 %v368
        %v814 = vunpack.c.h.b16 %v368
        %v815 = vunpack.c.l.b16 %v369
        %v816 = vunpack.c.l.b16 %v370
        %v817 = vunpack.c.h.b16 %v370
        %v818 = vunpack.c.l.b16 %v371
        %v819 = vunpack.c.l.b16 %v372
        %v820 = vunpack.c.h.b16 %v372
        %v821 = vunpack.c.l.b16 %v373
        %v822 = vunpack.c.l.b16 %v374
        %v823 = vunpack.c.h.b16 %v374
        %v824 = vunpack.c.l.b16 %v375
        %v825 = vunpack.c.l.b16 %v376
        %v826 = vunpack.c.h.b16 %v376
        %v827 = vunpack.c.l.b16 %v377
        %v828 = vunpack.c.l.b16 %v378
        %v829 = vunpack.c.h.b16 %v378
        %v830 = vunpack.c.l.b16 %v379
        %v831 = vunpack.c.l.b16 %v380
        %v832 = vunpack.c.h.b16 %v380
        %v833 = vunpack.c.l.b16 %v381
        %v834 = vunpack.c.l.b16 %v382
        %v835 = vunpack.c.h.b16 %v382
        %v836 = vunpack.c.l.b16 %v383
        %v837 = vunpack.c.l.b16 %v384
        %v838 = vunpack.c.h.b16 %v384
        %v839 = vunpack.c.l.b16 %v385
        %v840 = vunpack.c.l.b16 %v386
        %v841 = vunpack.c.h.b16 %v386
        %v842 = vunpack.c.l.b16 %v387
        %v843 = vunpack.c.l.b16 %v388
        %v844 = vunpack.c.h.b16 %v388
        %v845 = vunpack.c.l.b16 %v389
        %v846 = vunpack.c.l.b16 %v390
        %v847 = vunpack.c.h.b16 %v390
        %v848 = vunpack.c.l.b16 %v391
        %v849 = vunpack.c.l.b16 %v392
        %v850 = vunpack.c.h.b16 %v392
        %v851 = vunpack.c.l.b16 %v393
        %v852 = vunpack.c.l.b16 %v394
        %v853 = vunpack.c.h.b16 %v394
        %v854 = vunpack.c.l.b16 %v395
        %v855 = vunpack.c.l.b16 %v396
        %v856 = vunpack.c.h.b16 %v396
        %v857 = vunpack.c.l.b16 %v397
        %v858 = vunpack.c.l.b16 %v398
        %v859 = vunpack.c.h.b16 %v398
        %v860 = vunpack.c.l.b16 %v399
        %v861 = vunpack.c.l.b16 %v400
        %v862 = vunpack.c.h.b16 %v400
        %v863 = vunpack.c.l.b16 %v401
        %v864 = vunpack.c.l.b16 %v402
        %v865 = vunpack.c.h.b16 %v402
        %v866 = vunpack.c.l.b16 %v403
        %v867 = vunpack.c.l.b16 %v404
        %v868 = vunpack.c.h.b16 %v404
        %v869 = vunpack.c.l.b16 %v405
        %v870 = vunpack.c.l.b16 %v406
        %v871 = vunpack.c.h.b16 %v406
        %v872 = vunpack.c.l.b16 %v407
        %v873 = vunpack.c.l.b16 %v408
        %v874 = vunpack.c.h.b16 %v408
        %v875 = vunpack.c.l.b16 %v409
        %v876 = vunpack.c.l.b16 %v410
        %v877 = vunpack.c.h.b16 %v410
        %v878 = vunpack.c.l.b16 %v411
        %v879 = vunpack.c.l.b16 %v412
        %v880 = vunpack.c.h.b16 %v412
        %v881 = vunpack.c.l.b16 %v413
        %v882 = vunpack.c.l.b16 %v414
        %v883 = vunpack.c.h.b16 %v414
        %v884 = vunpack.c.l.b16 %v415
        %v885 = vunpack.c.l.b16 %v416
        %v886 = vunpack.c.h.b16 %v416
        %v887 = vunpack.c.l.b16 %v417
        %v888 = vunpack.c.l.b16 %v418
        %v889 = vunpack.c.h.b16 %v418
        %v890 = vunpack.c.l.b16 %v419
        %v891 = vunpack.c.l.b16 %v420
        %v892 = vunpack.c.h.b16 %v420
        %v893 = vunpack.c.l.b16 %v421
        %v894 = vunpack.c.l.b16 %v422
        %v895 = vunpack.c.h.b16 %v422
        %v896 = vunpack.c.l.b16 %v423
        %v897 = vunpack.c.l.b16 %v424
        %v898 = vunpack.c.h.b16 %v424
        %v899 = vunpack.c.l.b16 %v425
        %v900 = vunpack.c.l.b16 %v426
        %v901 = vunpack.c.h.b16 %v426
        %v902 = vunpack.c.l.b16 %v427
        %v903 = vunpack.c.l.b16 %v428
        %v904 = vunpack.c.h.b16 %v428
        %v905 = vunpack.c.l.b16 %v429
        %v906 = vunpack.c.l.b16 %v430
        %v907 = vunpack.c.h.b16 %v430
        %v908 = vunpack.c.l.b16 %v431
        %v909 = vunpack.c.l.b16 %v432
        %v910 = vunpack.c.h.b16 %v432
        %v911 = vunpack.c.l.b16 %v433
        %v912 = vunpack.c.l.b16 %v434
        %v913 = vunpack.c.h.b16 %v434
        %v914 = vunpack.c.l.b16 %v435
        %v915 = vunpack.c.l.b16 %v436
        %v916 = vunpack.c.h.b16 %v436
        %v917 = vunpack.c.l.b16 %v437
        %v918 = vunpack.c.l.b16 %v438
        %v919 = vunpack.c.h.b16 %v438
        %v920 = vunpack.c.l.b16 %v439
        %v921 = vunpack.c.l.b16 %v440
        %v922 = vunpack.c.h.b16 %v440
        %v923 = vunpack.c.l.b16 %v441
        %v924 = vunpack.c.l.b16 %v442
        %v925 = vunpack.c.h.b16 %v442
        %v926 = vunpack.c.l.b16 %v443
        %v927 = vunpack.c.l.b16 %v444
        %v928 = vunpack.c.h.b16 %v444
        %v929 = vunpack.c.l.b16 %v445
        %v930 = vunpack.c.l.b16 %v446
        %v931 = vunpack.c.h.b16 %v446
        %v932 = vunpack.c.l.b16 %v447
        %v933 = vunpack.c.l.b16 %v448
        %v934 = vunpack.c.h.b16 %v448
        %v935 = vunpack.c.l.b16 %v449
        %v936 = vunpack.c.l.b16 %v450
        %v937 = vunpack.c.h.b16 %v450
        %v938 = vunpack.c.l.b16 %v451
        %v939 = vunpack.c.l.b16 %v452
        %v940 = vunpack.c.h.b16 %v452
        %v941 = vunpack.c.l.b16 %v453
        %v942 = vunpack.c.l.b16 %v454
        %v943 = vunpack.c.h.b16 %v454
        %v944 = vunpack.c.l.b16 %v455
        %v945 = vunpack.c.l.b16 %v456
        %v946 = vunpack.c.h.b16 %v456
        %v947 = vunpack.c.l.b16 %v457
        %v948 = vunpack.c.l.b16 %v458
        %v949 = vunpack.c.h.b16 %v458
        %v950 = vunpack.c.l.b16 %v459
        %v951 = vunpack.c.l.b16 %v460
        %v952 = vunpack.c.h.b16 %v460
        %v953 = vunpack.c.l.b16 %v461
        %v954 = vunpack.c.l.b16 %v462
        %v955 = vunpack.c.h.b16 %v462
        %v956 = vunpack.c.l.b16 %v463
        %v957 = vunpack.c.l.b16 %v464
        %v958 = vunpack.c.h.b16 %v464
        %v959 = vunpack.c.l.b16 %v465
        %v960 = vunpack.c.l.b16 %v466
        %v961 = vunpack.c.h.b16 %v466
        %v962 = vunpack.c.l.b16 %v467
        %v963 = vunpack.c.l.b16 %v468
        %v964 = vunpack.c.h.b16 %v468
        %v965 = vunpack.c.l.b16 %v469
        %v966 = vunpack.c.l.b16 %v470
        %v967 = vunpack.c.h.b16 %v470
        %v968 = vunpack.c.l.b16 %v471
        %v969 = vunpack.c.l.b16 %v472
        %v970 = vunpack.c.h.b16 %v472
        %v971 = vunpack.c.l.b16 %v473
        %v972 = vunpack.c.l.b16 %v474
        %v973 = vunpack.c.h.b16 %v474
        %v974 = vunpack.c.l.b16 %v475
        %v975 = vunpack.c.l.b16 %v476
        %v976 = vunpack.c.h.b16 %v476
        %v977 = vunpack.c.l.b16 %v477
        %v978 = vunpack.c.l.b16 %v478
        %v979 = vunpack.c.h.b16 %v478
        %v980 = vunpack.c.l.b16 %v479
        %v981 = vunpack.c.l.b16 %v480
        %v982 = vunpack.c.h.b16 %v480
        %v983 = vunpack.c.l.b16 %v481
        %v984 = vunpack.c.l.b16 %v482
        %v985 = vunpack.c.h.b16 %v482
        %v986 = vunpack.c.l.b16 %v483
        %v987 = vunpack.c.l.b16 %v484
        %v988 = vunpack.c.h.b16 %v484
        %v989 = vunpack.c.l.b16 %v485
        %v990 = vunpack.c.l.b16 %v486
        %v991 = vunpack.c.h.b16 %v486
        %v992 = vunpack.c.l.b16 %v487
        %v993 = vunpack.c.l.b16 %v488
        %v994 = vunpack.c.h.b16 %v488
        %v995 = vunpack.c.l.b16 %v489
        %v996 = vunpack.c.l.b16 %v490
        %v997 = vunpack.c.h.b16 %v490
        %v998 = vunpack.c.l.b16 %v491
        %v999 = vunpack.c.l.b16 %v492
        %v1000 = vunpack.c.h.b16 %v492
        %v1001 = vunpack.c.l.b16 %v493
        %v1002 = vunpack.c.l.b16 %v494
        %v1003 = vunpack.c.h.b16 %v494
        %v1004 = vunpack.c.l.b16 %v495
        %v1005 = vunpack.c.l.b16 %v496
        %v1006 = vunpack.c.h.b16 %v496
        %v1007 = vunpack.c.l.b16 %v497
        %v1008 = vunpack.c.l.b16 %v498
        %v1009 = vunpack.c.h.b16 %v498
        %v1010 = vunpack.c.l.b16 %v499
        %v1011 = vunpack.c.l.b16 %v500
        %v1012 = vunpack.c.h.b16 %v500
        %v1013 = vunpack.c.l.b16 %v501
        %v1014 = vunpack.c.l.b16 %v502
        %v1015 = vunpack.c.h.b16 %v502
        %v1016 = vunpack.c.l.b16 %v503
        %v1017 = vunpack.c.l.b16 %v504
        %v1018 = vunpack.c.h.b16 %v504
        %v1019 = vunpack.c.l.b16 %v505
        %v1020 = vunpack.c.l.b16 %v506
        %v1021 = vunpack.c.h.b16 %v506
        %v1022 = vunpack.c.l.b16 %v507
        %v1023 = vunpack.c.l.b16 %v508
        %v1024 = vunpack.c.h.b16 %v508
        %v1025 = vunpack.c.l.b16 %v509
        %v1026 = vunpack.c.l.b16 %v510
        %v1027 = vunpack.c.h.b16 %v510
        %v1028 = vunpack.c.l.b16 %v511
        %v1029 = vunpack.c.l.b16 %v512
        %v1030 = vunpack.c.h.b16 %v512
        %v1031 = vunpack.c.l.b16 %v513
        %v1032 = vunpack.c.l.b16 %v514
        %v1033 = vunpack.c.h.b16 %v514
        %v1034 = vunpack.c.l.b16 %v515
        %v1035 = vunpack.c.l.b16 %v516
        %v1036 = vunpack.c.h.b16 %v516
        %v1037 = vunpack.c.l.b16 %v517
        %v1038 = vunpack.c.l.b16 %v518
        %v1039 = vunpack.c.h.b16 %v518
        %v1040 = vunpack.c.l.b16 %v519
        %v1041 = vunpack.c.l.b16 %v520
        %v1042 = vunpack.c.h.b16 %v520
        %v1043 = vunpack.c.l.b16 %v521
        %v1044 = vunpack.c.l.b16 %v522
        %v1045 = vunpack.c.h.b16 %v522
        %v1046 = vunpack.c.l.b16 %v523
        %v1047 = vunpack.c.l.b16 %v524
        %v1048 = vunpack.c.h.b16 %v524
        %v1049 = vunpack.c.l.b16 %v525
        %v1050 = vunpack.c.l.b16 %v526
        %v1051 = vunpack.c.h.b16 %v526
        %v1052 = vunpack.c.l.b16 %v527
        %v1053 = vunpack.c.l.b16 %v528
        %v1054 = vunpack.c.h.b16 %v528
        %v1055 = vunpack.c.l.b16 %v529
        %v1056 = vunpack.c.l.b16 %v530
        %v1057 = vunpack.c.h.b16 %v530
        %v1058 = vunpack.c.l.b16 %v531
        %v1059 = vunpack.c.l.b16 %v532
        %v1060 = vunpack.c.h.b16 %v532
        %v1061 = vunpack.c.l.b16 %v533
        %v1062 = vunpack.c.l.b16 %v534
        %v1063 = vunpack.c.h.b16 %v534
        %v1064 = vunpack.c.l.b16 %v535
        %v1065 = vunpack.c.l.b16 %v536
        %v1066 = vunpack.c.h.b16 %v536
        %v1067 = vunpack.c.l.b16 %v537
        %v1068 = vunpack.c.l.b16 %v538
        %v1069 = vunpack.c.h.b16 %v538
        %v1070 = vunpack.c.l.b16 %v539
        %v1071 = vpack.c.b16 %v780, %v777
        %v1072 = vpack.c.b16 %v781, %v778
        %v1073 = vpack.c.b16 %v782, %v779
        %v1074 = vpack.c.b16 %v786, %v783
        %v1075 = vpack.c.b16 %v787, %v784
        %v1076 = vpack.c.b16 %v788, %v785
        %v1077 = vpack.c.b16 %v792, %v789
        %v1078 = vpack.c.b16 %v793, %v790
        %v1079 = vpack.c.b16 %v794, %v791
        %v1080 = vpack.c.b16 %v798, %v795
        %v1081 = vpack.c.b16 %v799, %v796
        %v1082 = vpack.c.b16 %v800, %v797
        %v1083 = vpack.c.b16 %v804, %v801
        %v1084 = vpack.c.b16 %v805, %v802
        %v1085 = vpack.c.b16 %v806, %v803
        %v1086 = vpack.c.b16 %v810, %v807
        %v1087 = vpack.c.b16 %v811, %v808
        %v1088 = vpack.c.b16 %v812, %v809
        %v1089 = vpack.c.b16 %v816, %v813
        %v1090 = vpack.c.b16 %v817, %v814
        %v1091 = vpack.c.b16 %v818, %v815
        %v1092 = vpack.c.b16 %v822, %v819
        %v1093 = vpack.c.b16 %v823, %v820
        %v1094 = vpack.c.b16 %v824, %v821
        %v1095 = vpack.c.b16 %v828, %v825
        %v1096 = vpack.c.b16 %v829, %v826
        %v1097 = vpack.c.b16 %v830, %v827
        %v1098 = vpack.c.b16 %v834, %v831
        %v1099 = vpack.c.b16 %v835, %v832
        %v1100 = vpack.c.b16 %v836, %v833
        %v1101 = vpack.c.b16 %v840, %v837
        %v1102 = vpack.c.b16 %v841, %v838
        %v1103 = vpack.c.b16 %v842, %v839
        %v1104 = vpack.c.b16 %v846, %v843
        %v1105 = vpack.c.b16 %v847, %v844
        %v1106 = vpack.c.b16 %v848, %v845
        %v1107 = vpack.c.b16 %v852, %v849
        %v1108 = vpack.c.b16 %v853, %v850
        %v1109 = vpack.c.b16 %v854, %v851
        %v1110 = vpack.c.b16 %v858, %v855
        %v1111 = vpack.c.b16 %v859, %v856
        %v1112 = vpack.c.b16 %v860, %v857
        %v1113 = vpack.c.b16 %v864, %v861
        %v1114 = vpack.c.b16 %v865, %v862
        %v1115 = vpack.c.b16 %v866, %v863
        %v1116 = vpack.c.b16 %v870, %v867
        %v1117 = vpack.c.b16 %v871, %v868
        %v1118 = vpack.c.b16 %v872, %v869
        %v1119 = vpack.c.b16 %v876, %v873
        %v1120 = vpack.c.b16 %v877, %v874
        %v1121 = vpack.c.b16 %v878, %v875
        %v1122 = vpack.c.b16 %v882, %v879
        %v1123 = vpack.c.b16 %v883, %v880
        %v1124 = vpack.c.b16 %v884, %v881
        %v1125 = vpack.c.b16 %v888, %v885
        %v1126 = vpack.c.b16 %v889, %v886
        %v1127 = vpack.c.b16 %v890, %v887
        %v1128 = vpack.c.b16 %v894, %v891
        %v1129 = vpack.c.b16 %v895, %v892
        %v1130 = vpack.c.b16 %v896, %v893
        %v1131 = vpack.c.b16 %v900, %v897
        %v1132 = vpack.c.b16 %v901, %v898
        %v1133 = vpack.c.b16 %v902, %v899
        %v1134 = vpack.c.b16 %v906, %v903
        %v1135 = vpack.c.b16 %v907, %v904
        %v1136 = vpack.c.b16 %v908, %v905
        %v1137 = vpack.c.b16 %v912, %v909
        %v1138 = vpack.c.b16 %v913, %v910
        %v1139 = vpack.c.b16 %v914, %v911
        %v1140 = vpack.c.b16 %v918, %v915
        %v1141 = vpack.c.b16 %v919, %v916
        %v1142 = vpack.c.b16 %v920, %v917
        %v1143 = vpack.c.b16 %v924, %v921
        %v1144 = vpack.c.b16 %v925, %v922
        %v1145 = vpack.c.b16 %v926, %v923
        %v1146 = vpack.c.b16 %v930, %v927
        %v1147 = vpack.c.b16 %v931, %v928
        %v1148 = vpack.c.b16 %v932, %v929
        %v1149 = vpack.c.b16 %v936, %v933
        %v1150 = vpack.c.b16 %v937, %v934
        %v1151 = vpack.c.b16 %v938, %v935
        %v1152 = vpack.c.b16 %v942, %v939
        %v1153 = vpack.c.b16 %v943, %v940
        %v1154 = vpack.c.b16 %v944, %v941
        %v1155 = vpack.c.b16 %v948, %v945
        %v1156 = vpack.c.b16 %v949, %v946
        %v1157 = vpack.c.b16 %v950, %v947
        %v1158 = vpack.c.b16 %v954, %v951
        %v1159 = vpack.c.b16 %v955, %v952
        %v1160 = vpack.c.b16 %v956, %v953
        %v1161 = vpack.c.b16 %v960, %v957
        %v1162 = vpack.c.b16 %v961, %v958
        %v1163 = vpack.c.b16 %v962, %v959
        %v1164 = vpack.c.b16 %v966, %v963
        %v1165 = vpack.c.b16 %v967, %v964
        %v1166 = vpack.c.b16 %v968, %v965
        %v1167 = vpack.c.b16 %v972, %v969
        %v1168 = vpack.c.b16 %v973, %v970
        %v1169 = vpack.c.b16 %v974, %v971
        %v1170 = vpack.c.b16 %v978, %v975
        %v1171 = vpack.c.b16 %v979, %v976
        %v1172 = vpack.c.b16 %v980, %v977
        %v1173 = vpack.c.b16 %v984, %v981
        %v1174 = vpack.c.b16 %v985, %v982
        %v1175 = vpack.c.b16 %v986, %v983
        %v1176 = vpack.c.b16 %v990, %v987
        %v1177 = vpack.c.b16 %v991, %v988
        %v1178 = vpack.c.b16 %v992, %v989
        %v1179 = vpack.c.b16 %v996, %v993
        %v1180 = vpack.c.b16 %v997, %v994
        %v1181 = vpack.c.b16 %v998, %v995
        %v1182 = vpack.c.b16 %v1002, %v999
        %v1183 = vpack.c.b16 %v1003, %v1000
        %v1184 = vpack.c.b16 %v1004, %v1001
        %v1185 = vpack.c.b16 %v1008, %v1005
        %v1186 = vpack.c.b16 %v1009, %v1006
        %v1187 = vpack.c.b16 %v1010, %v1007
        %v1188 = vpack.c.b16 %v1014, %v1011
        %v1189 = vpack.c.b16 %v1015, %v1012
        %v1190 = vpack.c.b16 %v1016, %v1013
        %v1191 = vpack.c.b16 %v1020, %v1017
        %v1192 = vpack.c.b16 %v1021, %v1018
        %v1193 = vpack.c.b16 %v1022, %v1019
        %v1194 = vpack.c.b16 %v1026, %v1023
        %v1195 = vpack.c.b16 %v1027, %v1024
        %v1196 = vpack.c.b16 %v1028, %v1025
        %v1197 = vpack.c.b16 %v1032, %v1029
        %v1198 = vpack.c.b16 %v1033, %v1030
        %v1199 = vpack.c.b16 %v1034, %v1031
        %v1200 = vpack.c.b16 %v1038, %v1035
        %v1201 = vpack.c.b16 %v1039, %v1036
        %v1202 = vpack.c.b16 %v1040, %v1037
        %v1203 = vpack.c.b16 %v1044, %v1041
        %v1204 = vpack.c.b16 %v1045, %v1042
        %v1205 = vpack.c.b16 %v1046, %v1043
        %v1206 = vpack.c.b16 %v1050, %v1047
        %v1207 = vpack.c.b16 %v1051, %v1048
        %v1208 = vpack.c.b16 %v1052, %v1049
        %v1209 = vpack.c.b16 %v1056, %v1053
        %v1210 = vpack.c.b16 %v1057, %v1054
        %v1211 = vpack.c.b16 %v1058, %v1055
        %v1212 = vpack.c.b16 %v1062, %v1059
        %v1213 = vpack.c.b16 %v1063, %v1060
        %v1214 = vpack.c.b16 %v1064, %v1061
        %v1215 = vpack.c.b16 %v1068, %v1065
        %v1216 = vpack.c.b16 %v1069, %v1066
        %v1217 = vpack.c.b16 %v1070, %v1067
        %vm1365 = vcmask 130048
        %v1367 = vsel %vm1365, %v574, 0
        %1369 = vmatprep.subr.bf16.mxu0 %v1072
        %1370 = vmatpush1.bf16.msra.mxu0 %v1071
        %1371 = vmatprep.subr.bf16.mxu0 %v1075
        %1372 = vmatpush1.bf16.msra.mxu0 %v1074
        %1373 = vmatprep.subr.bf16.mxu0 %v1078
        %1374 = vmatpush1.bf16.msra.mxu0 %v1077
        %1375 = vmatprep.subr.bf16.mxu0 %v1081
        %1376 = vmatpush1.bf16.msra.mxu0 %v1080
        %1377 = vmatprep.subr.bf16.mxu0 %v1084
        %1378 = vmatpush1.bf16.msra.mxu0 %v1083
        %1379 = vmatprep.subr.bf16.mxu0 %v1087
        %1380 = vmatpush1.bf16.msra.mxu0 %v1086
        %1381 = vmatprep.subr.bf16.mxu0 %v1090
        %1382 = vmatpush1.bf16.msra.mxu0 %v1089
        %1383 = vmatprep.subr.bf16.mxu0 %v1093
        %1384 = vmatpush1.bf16.msra.mxu0 %v1092
        %1385 = vmatprep.subr.bf16.mxu0 %v1096
        %1386 = vmatpush1.bf16.msra.mxu0 %v1095
        %1387 = vmatprep.subr.bf16.mxu0 %v1099
        %1388 = vmatpush1.bf16.msra.mxu0 %v1098
        %1389 = vmatprep.subr.bf16.mxu0 %v1102
        %1390 = vmatpush1.bf16.msra.mxu0 %v1101
        %1391 = vmatprep.subr.bf16.mxu0 %v1105
        %1392 = vmatpush1.bf16.msra.mxu0 %v1104
        %1393 = vmatprep.subr.bf16.mxu0 %v1108
        %1394 = vmatpush1.bf16.msra.mxu0 %v1107
        %1395 = vmatprep.subr.bf16.mxu0 %v1111
        %1396 = vmatpush1.bf16.msra.mxu0 %v1110
        %1397 = vmatprep.subr.bf16.mxu0 %v1114
        %1398 = vmatpush1.bf16.msra.mxu0 %v1113
        %1399 = vmatprep.subr.bf16.mxu0 %v1117
        %1400 = vmatpush1.bf16.msra.mxu0 %v1116
        %1401 = vmatprep.mubr.bf16.mxu0 %v569
        %1402 = vmatmul.mubr.bf16.gmra.mrb[0].mxu0 %v568
        %v1403 = vpop.f32.mrb[0].mxu0
        %v1404 = vadd.f32 %v545, %v1403
        %v1405 = vpop.f32.mrb[0].mxu0
        %v1406 = vadd.f32 %v549, %v1405
        %v1407 = vpop.f32.mrb[0].mxu0
        %v1408 = vpop.f32.mrb[0].mxu0
        %1409 = vdwg.mxu0
        %1410 = vmatprep.subr.bf16.mxu0 %v1120
        %1411 = vmatpush1.bf16.msra.mxu0 %v1119
        %1412 = vmatprep.subr.bf16.mxu0 %v1123
        %1413 = vmatpush1.bf16.msra.mxu0 %v1122
        %1414 = vmatprep.subr.bf16.mxu0 %v1126
        %1415 = vmatpush1.bf16.msra.mxu0 %v1125
        %1416 = vmatprep.subr.bf16.mxu0 %v1129
        %1417 = vmatpush1.bf16.msra.mxu0 %v1128
        %1418 = vmatprep.subr.bf16.mxu0 %v1132
        %1419 = vmatpush1.bf16.msra.mxu0 %v1131
        %1420 = vmatprep.subr.bf16.mxu0 %v1135
        %1421 = vmatpush1.bf16.msra.mxu0 %v1134
        %1422 = vmatprep.subr.bf16.mxu0 %v1138
        %1423 = vmatpush1.bf16.msra.mxu0 %v1137
        %1424 = vmatprep.subr.bf16.mxu0 %v1141
        %1425 = vmatpush1.bf16.msra.mxu0 %v1140
        %1426 = vmatprep.subr.bf16.mxu0 %v1144
        %1427 = vmatpush1.bf16.msra.mxu0 %v1143
        %1428 = vmatprep.subr.bf16.mxu0 %v1147
        %1429 = vmatpush1.bf16.msra.mxu0 %v1146
        %1430 = vmatprep.subr.bf16.mxu0 %v1150
        %1431 = vmatpush1.bf16.msra.mxu0 %v1149
        %1432 = vmatprep.subr.bf16.mxu0 %v1153
        %1433 = vmatpush1.bf16.msra.mxu0 %v1152
        %1434 = vmatprep.subr.bf16.mxu0 %v1156
        %1435 = vmatpush1.bf16.msra.mxu0 %v1155
        %1436 = vmatprep.subr.bf16.mxu0 %v1159
        %1437 = vmatpush1.bf16.msra.mxu0 %v1158
        %1438 = vmatprep.subr.bf16.mxu0 %v1162
        %1439 = vmatpush1.bf16.msra.mxu0 %v1161
        %1440 = vmatprep.subr.bf16.mxu0 %v1165
        %1441 = vmatpush1.bf16.msra.mxu0 %v1164
        %1442 = vmatprep.mubr.bf16.mxu0 %v571
        %1443 = vmatmul.mubr.bf16.gmra.mrb[0].mxu0 %v570
        %v1444 = vpop.f32.mrb[0].mxu0
        %v1445 = vadd.f32 %v1404, %v1444
        %v1446 = vpop.f32.mrb[0].mxu0
        %v1447 = vadd.f32 %v1406, %v1446
        %v1448 = vpop.f32.mrb[0].mxu0
        %v1449 = vpop.f32.mrb[0].mxu0
        %1450 = vdwg.mxu0
        %1451 = vmatprep.subr.bf16.mxu0 %v1168
        %1452 = vmatpush1.bf16.msra.mxu0 %v1167
        %1453 = vmatprep.subr.bf16.mxu0 %v1171
        %1454 = vmatpush1.bf16.msra.mxu0 %v1170
        %1455 = vmatprep.subr.bf16.mxu0 %v1174
        %1456 = vmatpush1.bf16.msra.mxu0 %v1173
        %1457 = vmatprep.subr.bf16.mxu0 %v1177
        %1458 = vmatpush1.bf16.msra.mxu0 %v1176
        %1459 = vmatprep.subr.bf16.mxu0 %v1180
        %1460 = vmatpush1.bf16.msra.mxu0 %v1179
        %1461 = vmatprep.subr.bf16.mxu0 %v1183
        %1462 = vmatpush1.bf16.msra.mxu0 %v1182
        %1463 = vmatprep.subr.bf16.mxu0 %v1186
        %1464 = vmatpush1.bf16.msra.mxu0 %v1185
        %1465 = vmatprep.subr.bf16.mxu0 %v1189
        %1466 = vmatpush1.bf16.msra.mxu0 %v1188
        %1467 = vmatprep.subr.bf16.mxu0 %v1192
        %1468 = vmatpush1.bf16.msra.mxu0 %v1191
        %1469 = vmatprep.subr.bf16.mxu0 %v1195
        %1470 = vmatpush1.bf16.msra.mxu0 %v1194
        %1471 = vmatprep.subr.bf16.mxu0 %v1198
        %1472 = vmatpush1.bf16.msra.mxu0 %v1197
        %1473 = vmatprep.subr.bf16.mxu0 %v1201
        %1474 = vmatpush1.bf16.msra.mxu0 %v1200
        %1475 = vmatprep.subr.bf16.mxu0 %v1204
        %1476 = vmatpush1.bf16.msra.mxu0 %v1203
        %1477 = vmatprep.subr.bf16.mxu0 %v1207
        %1478 = vmatpush1.bf16.msra.mxu0 %v1206
        %1479 = vmatprep.subr.bf16.mxu0 %v1210
        %1480 = vmatpush1.bf16.msra.mxu0 %v1209
        %1481 = vmatprep.subr.bf16.mxu0 %v1213
        %1482 = vmatpush1.bf16.msra.mxu0 %v1212
        %1483 = vmatprep.mubr.bf16.mxu0 %v573
        %1484 = vmatmul.mubr.bf16.gmra.mrb[0].mxu0 %v572
        %v1485 = vpop.f32.mrb[0].mxu0
        %v1486 = vadd.f32 %v1445, %v1485
        %v1487 = vpop.f32.mrb[0].mxu0
        %v1488 = vadd.f32 %v1447, %v1487
        %v1489 = vpop.f32.mrb[0].mxu0
        %v1490 = vpop.f32.mrb[0].mxu0
        %1491 = vdwg.mxu0
        %1492 = vmatprep.subr.bf16.mxu0 %v1216
        %1493 = vmatpush1.bf16.msra.mxu0 %v1215
        %1494 = vmatprep.subr.bf16.mxu0 0
        %1495 = vmatpush1.bf16.msra.mxu0 0
        %1496 = vmatprep.subr.bf16.mxu0 0
        %1497 = vmatpush1.bf16.msra.mxu0 0
        %1498 = vmatprep.subr.bf16.mxu0 0
        %1499 = vmatpush1.bf16.msra.mxu0 0
        %1500 = vmatprep.subr.bf16.mxu0 0
        %1501 = vmatpush1.bf16.msra.mxu0 0
        %1502 = vmatprep.subr.bf16.mxu0 0
        %1503 = vmatpush1.bf16.msra.mxu0 0
        %1504 = vmatprep.subr.bf16.mxu0 0
        %1505 = vmatpush1.bf16.msra.mxu0 0
        %1506 = vmatprep.subr.bf16.mxu0 0
        %1507 = vmatpush1.bf16.msra.mxu0 0
        %1508 = vmatprep.subr.bf16.mxu0 0
        %1509 = vmatpush1.bf16.msra.mxu0 0
        %1510 = vmatprep.subr.bf16.mxu0 0
        %1511 = vmatpush1.bf16.msra.mxu0 0
        %1512 = vmatprep.subr.bf16.mxu0 0
        %1513 = vmatpush1.bf16.msra.mxu0 0
        %1514 = vmatprep.subr.bf16.mxu0 0
        %1515 = vmatpush1.bf16.msra.mxu0 0
        %1516 = vmatprep.subr.bf16.mxu0 0
        %1517 = vmatpush1.bf16.msra.mxu0 0
        %1518 = vmatprep.subr.bf16.mxu0 0
        %1519 = vmatpush1.bf16.msra.mxu0 0
        %1520 = vmatprep.subr.bf16.mxu0 0
        %1521 = vmatpush1.bf16.msra.mxu0 0
        %1522 = vmatprep.subr.bf16.mxu0 0
        %1523 = vmatpush1.bf16.msra.mxu0 0
        %1524 = vmatprep.mubr.bf16.mxu0 0
        %1525 = vmatmul.mubr.bf16.gmra.mrb[0].mxu0 %v1367
        %v1526 = vpop.f32.mrb[0].mxu0
        %v1527 = vadd.f32 %v1486, %v1526
        %v1528 = vpop.f32.mrb[0].mxu0
        %v1529 = vadd.f32 %v1488, %v1528
        %v1530 = vpop.f32.mrb[0].mxu0
        %v1531 = vpop.f32.mrb[0].mxu0
        %1532 = vdwg.mxu0
        %1533 = vmatprep.subr.bf16.mxu0 0
        %1534 = vmatpush1.bf16.msra.mxu0 %v1073
        %1535 = vmatprep.subr.bf16.mxu0 0
        %1536 = vmatpush1.bf16.msra.mxu0 %v1076
        %1537 = vmatprep.subr.bf16.mxu0 0
        %1538 = vmatpush1.bf16.msra.mxu0 %v1079
        %1539 = vmatprep.subr.bf16.mxu0 0
        %1540 = vmatpush1.bf16.msra.mxu0 %v1082
        %1541 = vmatprep.subr.bf16.mxu0 0
        %1542 = vmatpush1.bf16.msra.mxu0 %v1085
        %1543 = vmatprep.subr.bf16.mxu0 0
        %1544 = vmatpush1.bf16.msra.mxu0 %v1088
        %1545 = vmatprep.subr.bf16.mxu0 0
        %1546 = vmatpush1.bf16.msra.mxu0 %v1091
        %1547 = vmatprep.subr.bf16.mxu0 0
        %1548 = vmatpush1.bf16.msra.mxu0 %v1094
        %1549 = vmatprep.subr.bf16.mxu0 0
        %1550 = vmatpush1.bf16.msra.mxu0 %v1097
        %1551 = vmatprep.subr.bf16.mxu0 0
        %1552 = vmatpush1.bf16.msra.mxu0 %v1100
        %1553 = vmatprep.subr.bf16.mxu0 0
        %1554 = vmatpush1.bf16.msra.mxu0 %v1103
        %1555 = vmatprep.subr.bf16.mxu0 0
        %1556 = vmatpush1.bf16.msra.mxu0 %v1106
        %1557 = vmatprep.subr.bf16.mxu0 0
        %1558 = vmatpush1.bf16.msra.mxu0 %v1109
        %1559 = vmatprep.subr.bf16.mxu0 0
        %1560 = vmatpush1.bf16.msra.mxu0 %v1112
        %1561 = vmatprep.subr.bf16.mxu0 0
        %1562 = vmatpush1.bf16.msra.mxu0 %v1115
        %1563 = vmatprep.subr.bf16.mxu0 0
        %1564 = vmatpush1.bf16.msra.mxu0 %v1118
        %1565 = vmatprep.mubr.bf16.mxu0 %v569
        %1566 = vmatmul.mubr.bf16.gmra.mrb[0].mxu0 %v568
        %v1567 = vpop.f32.mrb[0].mxu0
        %v1568 = vadd.f32 %v553, %v1567
        %v1569 = vpop.f32.mrb[0].mxu0
        %v1570 = vpop.f32.mrb[0].mxu0
        %v1571 = vpop.f32.mrb[0].mxu0
        %1572 = vdwg.mxu0
        %1573 = vmatprep.subr.bf16.mxu0 0
        %1574 = vmatpush1.bf16.msra.mxu0 %v1121
        %1575 = vmatprep.subr.bf16.mxu0 0
        %1576 = vmatpush1.bf16.msra.mxu0 %v1124
        %1577 = vmatprep.subr.bf16.mxu0 0
        %1578 = vmatpush1.bf16.msra.mxu0 %v1127
        %1579 = vmatprep.subr.bf16.mxu0 0
        %1580 = vmatpush1.bf16.msra.mxu0 %v1130
        %1581 = vmatprep.subr.bf16.mxu0 0
        %1582 = vmatpush1.bf16.msra.mxu0 %v1133
        %1583 = vmatprep.subr.bf16.mxu0 0
        %1584 = vmatpush1.bf16.msra.mxu0 %v1136
        %1585 = vmatprep.subr.bf16.mxu0 0
        %1586 = vmatpush1.bf16.msra.mxu0 %v1139
        %1587 = vmatprep.subr.bf16.mxu0 0
        %1588 = vmatpush1.bf16.msra.mxu0 %v1142
        %1589 = vmatprep.subr.bf16.mxu0 0
        %1590 = vmatpush1.bf16.msra.mxu0 %v1145
        %1591 = vmatprep.subr.bf16.mxu0 0
        %1592 = vmatpush1.bf16.msra.mxu0 %v1148
        %1593 = vmatprep.subr.bf16.mxu0 0
        %1594 = vmatpush1.bf16.msra.mxu0 %v1151
        %1595 = vmatprep.subr.bf16.mxu0 0
        %1596 = vmatpush1.bf16.msra.mxu0 %v1154
        %1597 = vmatprep.subr.bf16.mxu0 0
        %1598 = vmatpush1.bf16.msra.mxu0 %v1157
        %1599 = vmatprep.subr.bf16.mxu0 0
        %1600 = vmatpush1.bf16.msra.mxu0 %v1160
        %1601 = vmatprep.subr.bf16.mxu0 0
        %1602 = vmatpush1.bf16.msra.mxu0 %v1163
        %1603 = vmatprep.subr.bf16.mxu0 0
        %1604 = vmatpush1.bf16.msra.mxu0 %v1166
        %1605 = vmatprep.mubr.bf16.mxu0 %v571
        %1606 = vmatmul.mubr.bf16.gmra.mrb[0].mxu0 %v570
        %v1607 = vpop.f32.mrb[0].mxu0
        %v1608 = vadd.f32 %v1568, %v1607
        %v1609 = vpop.f32.mrb[0].mxu0
        %v1610 = vpop.f32.mrb[0].mxu0
        %v1611 = vpop.f32.mrb[0].mxu0
        %1612 = vdwg.mxu0
        %1613 = vmatprep.subr.bf16.mxu0 0
        %1614 = vmatpush1.bf16.msra.mxu0 %v1169
        %1615 = vmatprep.subr.bf16.mxu0 0
        %1616 = vmatpush1.bf16.msra.mxu0 %v1172
        %1617 = vmatprep.subr.bf16.mxu0 0
        %1618 = vmatpush1.bf16.msra.mxu0 %v1175
        %1619 = vmatprep.subr.bf16.mxu0 0
        %1620 = vmatpush1.bf16.msra.mxu0 %v1178
        %1621 = vmatprep.subr.bf16.mxu0 0
        %1622 = vmatpush1.bf16.msra.mxu0 %v1181
        %1623 = vmatprep.subr.bf16.mxu0 0
        %1624 = vmatpush1.bf16.msra.mxu0 %v1184
        %1625 = vmatprep.subr.bf16.mxu0 0
        %1626 = vmatpush1.bf16.msra.mxu0 %v1187
        %1627 = vmatprep.subr.bf16.mxu0 0
        %1628 = vmatpush1.bf16.msra.mxu0 %v1190
        %1629 = vmatprep.subr.bf16.mxu0 0
        %1630 = vmatpush1.bf16.msra.mxu0 %v1193
        %1631 = vmatprep.subr.bf16.mxu0 0
        %1632 = vmatpush1.bf16.msra.mxu0 %v1196
        %1633 = vmatprep.subr.bf16.mxu0 0
        %1634 = vmatpush1.bf16.msra.mxu0 %v1199
        %1635 = vmatprep.subr.bf16.mxu0 0
        %1636 = vmatpush1.bf16.msra.mxu0 %v1202
        %1637 = vmatprep.subr.bf16.mxu0 0
        %1638 = vmatpush1.bf16.msra.mxu0 %v1205
        %1639 = vmatprep.subr.bf16.mxu0 0
        %1640 = vmatpush1.bf16.msra.mxu0 %v1208
        %1641 = vmatprep.subr.bf16.mxu0 0
        %1642 = vmatpush1.bf16.msra.mxu0 %v1211
        %1643 = vmatprep.subr.bf16.mxu0 0
        %1644 = vmatpush1.bf16.msra.mxu0 %v1214
        %1645 = vmatprep.mubr.bf16.mxu0 %v573
        %1646 = vmatmul.mubr.bf16.gmra.mrb[0].mxu0 %v572
        %v1647 = vpop.f32.mrb[0].mxu0
        %v1648 = vadd.f32 %v1608, %v1647
        %v1649 = vpop.f32.mrb[0].mxu0
        %v1650 = vpop.f32.mrb[0].mxu0
        %v1651 = vpop.f32.mrb[0].mxu0
        %1652 = vdwg.mxu0
        %1653 = vmatprep.subr.bf16.mxu0 0
        %1654 = vmatpush1.bf16.msra.mxu0 %v1217
        %1655 = vmatprep.subr.bf16.mxu0 0
        %1656 = vmatpush1.bf16.msra.mxu0 0
        %1657 = vmatprep.subr.bf16.mxu0 0
        %1658 = vmatpush1.bf16.msra.mxu0 0
        %1659 = vmatprep.subr.bf16.mxu0 0
        %1660 = vmatpush1.bf16.msra.mxu0 0
        %1661 = vmatprep.subr.bf16.mxu0 0
        %1662 = vmatpush1.bf16.msra.mxu0 0
        %1663 = vmatprep.subr.bf16.mxu0 0
        %1664 = vmatpush1.bf16.msra.mxu0 0
        %1665 = vmatprep.subr.bf16.mxu0 0
        %1666 = vmatpush1.bf16.msra.mxu0 0
        %1667 = vmatprep.subr.bf16.mxu0 0
        %1668 = vmatpush1.bf16.msra.mxu0 0
        %1669 = vmatprep.subr.bf16.mxu0 0
        %1670 = vmatpush1.bf16.msra.mxu0 0
        %1671 = vmatprep.subr.bf16.mxu0 0
        %1672 = vmatpush1.bf16.msra.mxu0 0
        %1673 = vmatprep.subr.bf16.mxu0 0
        %1674 = vmatpush1.bf16.msra.mxu0 0
        %1675 = vmatprep.subr.bf16.mxu0 0
        %1676 = vmatpush1.bf16.msra.mxu0 0
        %1677 = vmatprep.subr.bf16.mxu0 0
        %1678 = vmatpush1.bf16.msra.mxu0 0
        %1679 = vmatprep.subr.bf16.mxu0 0
        %1680 = vmatpush1.bf16.msra.mxu0 0
        %1681 = vmatprep.subr.bf16.mxu0 0
        %1682 = vmatpush1.bf16.msra.mxu0 0
        %1683 = vmatprep.subr.bf16.mxu0 0
        %1684 = vmatpush1.bf16.msra.mxu0 0
        %1685 = vmatprep.mubr.bf16.mxu0 0
        %1686 = vmatmul.mubr.bf16.gmra.mrb[0].mxu0 %v1367
        %v1687 = vpop.f32.mrb[0].mxu0
        %v1688 = vadd.f32 %v1648, %v1687
        %v1689 = vpop.f32.mrb[0].mxu0
        %v1690 = vpop.f32.mrb[0].mxu0
        %v1691 = vpop.f32.mrb[0].mxu0
        %1692 = vdwg.mxu0
        %v1693 = vmul.f32 %v1527, 0.5
        %v1694 = vmul.f32 %v1529, 0.5
        %v1695 = vmul.f32 %v1688, 0.5
        %v1696 = vtanh.pop %v1693
        %v1697 = vtanh.pop %v1694
        %v1698 = vtanh.pop %v1695
        %v1699 = vadd.f32 %v1696, 1.0
        %v1700 = vadd.f32 %v1697, 1.0
        %v1701 = vadd.f32 %v1698, 1.0
        %v1702 = vmul.f32 %v1699, 0.5
        %v1703 = vmul.f32 %v1700, 0.5
        %v1704 = vmul.f32 %v1701, 0.5
        %v1705 = vpack.c.bf16 %v1702, %v1702
        %v1706 = vpack.c.bf16 %v1703, %v1703
        %v1707 = vpack.c.bf16 %v1704, %v1704
        %v1708 = vld [vmem:[#allocation7] sm:$0xff]
        %v1709 = vld [vmem:[#allocation7 + $0x8] sm:$0xff]
        %v1710 = vld [vmem:[#allocation7 + $0x10] sm:$0xff]
        %v1711 = vld [vmem:[#allocation7 + $0x18] sm:$0xff]
        %v1712 = vld [vmem:[#allocation7 + $0x20] sm:$0xff]
        %v1713 = vld [vmem:[#allocation7 + $0x28] sm:$0xff]
        %v1714 = vld [vmem:[#allocation7 + $0x30] sm:$0xff]
        %v1715 = vld [vmem:[#allocation7 + $0x38] sm:$0xff]
        %v1716 = vld [vmem:[#allocation7 + $0x40] sm:$0xff]
        %v1717 = vld [vmem:[#allocation7 + $0x48] sm:$0xff]
        %v1718 = vld [vmem:[#allocation7 + $0x50] sm:$0xff]
        %v1719 = vld [vmem:[#allocation7 + $0x58] sm:$0xff]
        %v1720 = vld [vmem:[#allocation7 + $0x60] sm:$0xff]
        %v1721 = vld [vmem:[#allocation7 + $0x68] sm:$0xff]
        %v1722 = vld [vmem:[#allocation7 + $0x70] sm:$0xff]
        %v1723 = vld [vmem:[#allocation7 + $0x78] sm:$0xff]
        %v1724 = vld [vmem:[#allocation7 + $0x80] sm:$0xff]
        %v1725 = vld [vmem:[#allocation7 + $0x88] sm:$0xff]
        %v1726 = vld [vmem:[#allocation7 + $0x90] sm:$0xff]
        %v1727 = vld [vmem:[#allocation7 + $0x98] sm:$0xff]
        %v1728 = vld [vmem:[#allocation7 + $0xa0] sm:$0xff]
        %v1729 = vld [vmem:[#allocation7 + $0xa8] sm:$0xff]
        %v1730 = vld [vmem:[#allocation7 + $0xb0] sm:$0xff]
        %v1731 = vld [vmem:[#allocation7 + $0xb8] sm:$0xff]
        %v1732 = vld [vmem:[#allocation7 + $0xc0] sm:$0xff]
        %v1733 = vld [vmem:[#allocation7 + $0xc8] sm:$0xff]
        %v1734 = vld [vmem:[#allocation7 + $0xd0] sm:$0xff]
        %v1735 = vld [vmem:[#allocation7 + $0xd8] sm:$0xff]
        %v1736 = vld [vmem:[#allocation7 + $0xe0] sm:$0xff]
        %v1737 = vld [vmem:[#allocation7 + $0xe8] sm:$0xff]
        %v1738 = vld [vmem:[#allocation7 + $0xf0] sm:$0xff]
        %v1739 = vld [vmem:[#allocation7 + $0xf8] sm:$0xff]
        %v1740 = vld [vmem:[#allocation7 + $0x100] sm:$0xff]
        %v1741 = vld [vmem:[#allocation7 + $0x108] sm:$0xff]
        %v1742 = vld [vmem:[#allocation7 + $0x110] sm:$0xff]
        %v1743 = vld [vmem:[#allocation7 + $0x118] sm:$0xff]
        %v1744 = vld [vmem:[#allocation7 + $0x120] sm:$0xff]
        %v1745 = vld [vmem:[#allocation7 + $0x128] sm:$0xff]
        %v1746 = vld [vmem:[#allocation7 + $0x130] sm:$0xff]
        %v1747 = vld [vmem:[#allocation7 + $0x138] sm:$0xff]
        %v1748 = vld [vmem:[#allocation7 + $0x140] sm:$0xff]
        %v1749 = vld [vmem:[#allocation7 + $0x148] sm:$0xff]
        %v1750 = vld [vmem:[#allocation7 + $0x150] sm:$0xff]
        %v1751 = vld [vmem:[#allocation7 + $0x158] sm:$0xff]
        %v1752 = vld [vmem:[#allocation7 + $0x160] sm:$0xff]
        %v1753 = vld [vmem:[#allocation7 + $0x168] sm:$0xff]
        %v1754 = vld [vmem:[#allocation7 + $0x170] sm:$0xff]
        %v1755 = vld [vmem:[#allocation7 + $0x178] sm:$0xff]
        %v1756 = vld [vmem:[%s4] sm:$0x3]
        %v1758 = vlaneseq
        %v1759 = vshrl.u32 %v1758, 7
        %v1760 = vsub.s32 0, %v1759
        %v1761 = vrot.slane %v1756, %v1760
        %v1762 = vlaneseq
        %v1763 = vshrl.u32 %v1762, 7
        %v1764 = vsub.s32 1, %v1763
        %v1765 = vrot.slane %v1756, %v1764
        %v1816 = vunpack.c.l.b16 %v1708
        %v1817 = vunpack.c.h.b16 %v1708
        %v1818 = vunpack.c.l.b16 %v1709
        %v1819 = vunpack.c.h.b16 %v1709
        %v1820 = vunpack.c.l.b16 %v1710
        %v1821 = vunpack.c.h.b16 %v1710
        %v1822 = vunpack.c.l.b16 %v1711
        %v1823 = vunpack.c.h.b16 %v1711
        %v1824 = vunpack.c.l.b16 %v1712
        %v1825 = vunpack.c.h.b16 %v1712
        %v1826 = vunpack.c.l.b16 %v1713
        %v1827 = vunpack.c.h.b16 %v1713
        %v1828 = vunpack.c.l.b16 %v1714
        %v1829 = vunpack.c.h.b16 %v1714
        %v1830 = vunpack.c.l.b16 %v1715
        %v1831 = vunpack.c.h.b16 %v1715
        %v1832 = vunpack.c.l.b16 %v1716
        %v1833 = vunpack.c.h.b16 %v1716
        %v1834 = vunpack.c.l.b16 %v1717
        %v1835 = vunpack.c.h.b16 %v1717
        %v1836 = vunpack.c.l.b16 %v1718
        %v1837 = vunpack.c.h.b16 %v1718
        %v1838 = vunpack.c.l.b16 %v1719
        %v1839 = vunpack.c.h.b16 %v1719
        %v1840 = vunpack.c.l.b16 %v1720
        %v1841 = vunpack.c.h.b16 %v1720
        %v1842 = vunpack.c.l.b16 %v1721
        %v1843 = vunpack.c.h.b16 %v1721
        %v1844 = vunpack.c.l.b16 %v1722
        %v1845 = vunpack.c.h.b16 %v1722
        %v1846 = vunpack.c.l.b16 %v1723
        %v1847 = vunpack.c.h.b16 %v1723
        %v1848 = vunpack.c.l.b16 %v1724
        %v1849 = vunpack.c.h.b16 %v1724
        %v1850 = vunpack.c.l.b16 %v1725
        %v1851 = vunpack.c.h.b16 %v1725
        %v1852 = vunpack.c.l.b16 %v1726
        %v1853 = vunpack.c.h.b16 %v1726
        %v1854 = vunpack.c.l.b16 %v1727
        %v1855 = vunpack.c.h.b16 %v1727
        %v1856 = vunpack.c.l.b16 %v1728
        %v1857 = vunpack.c.h.b16 %v1728
        %v1858 = vunpack.c.l.b16 %v1729
        %v1859 = vunpack.c.h.b16 %v1729
        %v1860 = vunpack.c.l.b16 %v1730
        %v1861 = vunpack.c.h.b16 %v1730
        %v1862 = vunpack.c.l.b16 %v1731
        %v1863 = vunpack.c.h.b16 %v1731
        %v1864 = vunpack.c.l.b16 %v1732
        %v1865 = vunpack.c.h.b16 %v1732
        %v1866 = vunpack.c.l.b16 %v1733
        %v1867 = vunpack.c.h.b16 %v1733
        %v1868 = vunpack.c.l.b16 %v1734
        %v1869 = vunpack.c.h.b16 %v1734
        %v1870 = vunpack.c.l.b16 %v1735
        %v1871 = vunpack.c.h.b16 %v1735
        %v1872 = vunpack.c.l.b16 %v1736
        %v1873 = vunpack.c.h.b16 %v1736
        %v1874 = vunpack.c.l.b16 %v1737
        %v1875 = vunpack.c.h.b16 %v1737
        %v1876 = vunpack.c.l.b16 %v1738
        %v1877 = vunpack.c.h.b16 %v1738
        %v1878 = vunpack.c.l.b16 %v1739
        %v1879 = vunpack.c.h.b16 %v1739
        %v1880 = vunpack.c.l.b16 %v1740
        %v1881 = vunpack.c.h.b16 %v1740
        %v1882 = vunpack.c.l.b16 %v1741
        %v1883 = vunpack.c.h.b16 %v1741
        %v1884 = vunpack.c.l.b16 %v1742
        %v1885 = vunpack.c.h.b16 %v1742
        %v1886 = vunpack.c.l.b16 %v1743
        %v1887 = vunpack.c.h.b16 %v1743
        %v1888 = vunpack.c.l.b16 %v1744
        %v1889 = vunpack.c.h.b16 %v1744
        %v1890 = vunpack.c.l.b16 %v1745
        %v1891 = vunpack.c.h.b16 %v1745
        %v1892 = vunpack.c.l.b16 %v1746
        %v1893 = vunpack.c.h.b16 %v1746
        %v1894 = vunpack.c.l.b16 %v1747
        %v1895 = vunpack.c.h.b16 %v1747
        %v1896 = vunpack.c.l.b16 %v1748
        %v1897 = vunpack.c.h.b16 %v1748
        %v1898 = vunpack.c.l.b16 %v1749
        %v1899 = vunpack.c.h.b16 %v1749
        %v1900 = vunpack.c.l.b16 %v1750
        %v1901 = vunpack.c.h.b16 %v1750
        %v1902 = vunpack.c.l.b16 %v1751
        %v1903 = vunpack.c.h.b16 %v1751
        %v1904 = vunpack.c.l.b16 %v1752
        %v1905 = vunpack.c.h.b16 %v1752
        %v1906 = vunpack.c.l.b16 %v1753
        %v1907 = vunpack.c.h.b16 %v1753
        %v1908 = vunpack.c.l.b16 %v1754
        %v1909 = vunpack.c.h.b16 %v1754
        %v1910 = vunpack.c.l.b16 %v1755
        %v1911 = vunpack.c.h.b16 %v1755
        %v1912 = vpack.c.b16 %v1818, %v1816
        %v1913 = vpack.c.b16 %v1819, %v1817
        %v1914 = vpack.c.b16 %v1822, %v1820
        %v1915 = vpack.c.b16 %v1823, %v1821
        %v1916 = vpack.c.b16 %v1826, %v1824
        %v1917 = vpack.c.b16 %v1827, %v1825
        %v1918 = vpack.c.b16 %v1830, %v1828
        %v1919 = vpack.c.b16 %v1831, %v1829
        %v1920 = vpack.c.b16 %v1834, %v1832
        %v1921 = vpack.c.b16 %v1835, %v1833
        %v1922 = vpack.c.b16 %v1838, %v1836
        %v1923 = vpack.c.b16 %v1839, %v1837
        %v1924 = vpack.c.b16 %v1842, %v1840
        %v1925 = vpack.c.b16 %v1843, %v1841
        %v1926 = vpack.c.b16 %v1846, %v1844
        %v1927 = vpack.c.b16 %v1847, %v1845
        %v1928 = vpack.c.b16 %v1850, %v1848
        %v1929 = vpack.c.b16 %v1851, %v1849
        %v1930 = vpack.c.b16 %v1854, %v1852
        %v1931 = vpack.c.b16 %v1855, %v1853
        %v1932 = vpack.c.b16 %v1858, %v1856
        %v1933 = vpack.c.b16 %v1859, %v1857
        %v1934 = vpack.c.b16 %v1862, %v1860
        %v1935 = vpack.c.b16 %v1863, %v1861
        %v1936 = vpack.c.b16 %v1866, %v1864
        %v1937 = vpack.c.b16 %v1867, %v1865
        %v1938 = vpack.c.b16 %v1870, %v1868
        %v1939 = vpack.c.b16 %v1871, %v1869
        %v1940 = vpack.c.b16 %v1874, %v1872
        %v1941 = vpack.c.b16 %v1875, %v1873
        %v1942 = vpack.c.b16 %v1878, %v1876
        %v1943 = vpack.c.b16 %v1879, %v1877
        %v1944 = vpack.c.b16 %v1882, %v1880
        %v1945 = vpack.c.b16 %v1883, %v1881
        %v1946 = vpack.c.b16 %v1886, %v1884
        %v1947 = vpack.c.b16 %v1887, %v1885
        %v1948 = vpack.c.b16 %v1890, %v1888
        %v1949 = vpack.c.b16 %v1891, %v1889
        %v1950 = vpack.c.b16 %v1894, %v1892
        %v1951 = vpack.c.b16 %v1895, %v1893
        %v1952 = vpack.c.b16 %v1898, %v1896
        %v1953 = vpack.c.b16 %v1899, %v1897
        %v1954 = vpack.c.b16 %v1902, %v1900
        %v1955 = vpack.c.b16 %v1903, %v1901
        %v1956 = vpack.c.b16 %v1906, %v1904
        %v1957 = vpack.c.b16 %v1907, %v1905
        %v1958 = vpack.c.b16 %v1910, %v1908
        %v1959 = vpack.c.b16 %v1911, %v1909
        %2008 = vmatprep.subr.bf16.mxu0 %v1913
        %2009 = vmatpush1.bf16.msra.mxu0 %v1912
        %2010 = vmatprep.subr.bf16.mxu0 %v1915
        %2011 = vmatpush1.bf16.msra.mxu0 %v1914
        %2012 = vmatprep.subr.bf16.mxu0 %v1917
        %2013 = vmatpush1.bf16.msra.mxu0 %v1916
        %2014 = vmatprep.subr.bf16.mxu0 %v1919
        %2015 = vmatpush1.bf16.msra.mxu0 %v1918
        %2016 = vmatprep.subr.bf16.mxu0 %v1921
        %2017 = vmatpush1.bf16.msra.mxu0 %v1920
        %2018 = vmatprep.subr.bf16.mxu0 %v1923
        %2019 = vmatpush1.bf16.msra.mxu0 %v1922
        %2020 = vmatprep.subr.bf16.mxu0 %v1925
        %2021 = vmatpush1.bf16.msra.mxu0 %v1924
        %2022 = vmatprep.subr.bf16.mxu0 %v1927
        %2023 = vmatpush1.bf16.msra.mxu0 %v1926
        %2024 = vmatprep.subr.bf16.mxu0 %v1929
        %2025 = vmatpush1.bf16.msra.mxu0 %v1928
        %2026 = vmatprep.subr.bf16.mxu0 %v1931
        %2027 = vmatpush1.bf16.msra.mxu0 %v1930
        %2028 = vmatprep.subr.bf16.mxu0 %v1933
        %2029 = vmatpush1.bf16.msra.mxu0 %v1932
        %2030 = vmatprep.subr.bf16.mxu0 %v1935
        %2031 = vmatpush1.bf16.msra.mxu0 %v1934
        %2032 = vmatprep.subr.bf16.mxu0 %v1937
        %2033 = vmatpush1.bf16.msra.mxu0 %v1936
        %2034 = vmatprep.subr.bf16.mxu0 %v1939
        %2035 = vmatpush1.bf16.msra.mxu0 %v1938
        %2036 = vmatprep.subr.bf16.mxu0 %v1941
        %2037 = vmatpush1.bf16.msra.mxu0 %v1940
        %2038 = vmatprep.subr.bf16.mxu0 %v1943
        %2039 = vmatpush1.bf16.msra.mxu0 %v1942
        %2040 = vmatprep.mubr.bf16.mxu0 %v1706
        %2041 = vmatmul.mubr.bf16.gmra.mrb[0].mxu0 %v1705
        %v2042 = vpop.f32.mrb[0].mxu0
        %v2043 = vadd.f32 %v1761, %v2042
        %v2044 = vpop.f32.mrb[0].mxu0
        %v2045 = vadd.f32 %v1765, %v2044
        %v2046 = vpop.f32.mrb[0].mxu0
        %v2047 = vpop.f32.mrb[0].mxu0
        %2048 = vdwg.mxu0
        %2049 = vmatprep.subr.bf16.mxu0 %v1945
        %2050 = vmatpush1.bf16.msra.mxu0 %v1944
        %2051 = vmatprep.subr.bf16.mxu0 %v1947
        %2052 = vmatpush1.bf16.msra.mxu0 %v1946
        %2053 = vmatprep.subr.bf16.mxu0 %v1949
        %2054 = vmatpush1.bf16.msra.mxu0 %v1948
        %2055 = vmatprep.subr.bf16.mxu0 %v1951
        %2056 = vmatpush1.bf16.msra.mxu0 %v1950
        %2057 = vmatprep.subr.bf16.mxu0 %v1953
        %2058 = vmatpush1.bf16.msra.mxu0 %v1952
        %2059 = vmatprep.subr.bf16.mxu0 %v1955
        %2060 = vmatpush1.bf16.msra.mxu0 %v1954
        %2061 = vmatprep.subr.bf16.mxu0 %v1957
        %2062 = vmatpush1.bf16.msra.mxu0 %v1956
        %2063 = vmatprep.subr.bf16.mxu0 %v1959
        %2064 = vmatpush1.bf16.msra.mxu0 %v1958
        %2065 = vmatprep.subr.bf16.mxu0 0
        %2066 = vmatpush1.bf16.msra.mxu0 0
        %2067 = vmatprep.subr.bf16.mxu0 0
        %2068 = vmatpush1.bf16.msra.mxu0 0
        %2069 = vmatprep.subr.bf16.mxu0 0
        %2070 = vmatpush1.bf16.msra.mxu0 0
        %2071 = vmatprep.subr.bf16.mxu0 0
        %2072 = vmatpush1.bf16.msra.mxu0 0
        %2073 = vmatprep.subr.bf16.mxu0 0
        %2074 = vmatpush1.bf16.msra.mxu0 0
        %2075 = vmatprep.subr.bf16.mxu0 0
        %2076 = vmatpush1.bf16.msra.mxu0 0
        %2077 = vmatprep.subr.bf16.mxu0 0
        %2078 = vmatpush1.bf16.msra.mxu0 0
        %2079 = vmatprep.subr.bf16.mxu0 0
        %2080 = vmatpush1.bf16.msra.mxu0 0
        %2081 = vmatprep.mubr.bf16.mxu0 0
        %2082 = vmatmul.mubr.bf16.gmra.mrb[0].mxu0 %v1707
        %v2083 = vpop.f32.mrb[0].mxu0
        %v2084 = vadd.f32 %v2043, %v2083
        %v2085 = vpop.f32.mrb[0].mxu0
        %v2086 = vadd.f32 %v2045, %v2085
        %v2087 = vpop.f32.mrb[0].mxu0
        %v2088 = vpop.f32.mrb[0].mxu0
        %2089 = vdwg.mxu0
        %v2090 = vmul.f32 %v2084, 0.5
        %v2091 = vmul.f32 %v2086, 0.5
        %v2092 = vtanh.pop %v2090
        %v2093 = vtanh.pop %v2091
        %v2094 = vadd.f32 %v2092, 1.0
        %v2095 = vadd.f32 %v2093, 1.0
        %v2096 = vmul.f32 %v2094, 0.5
        %v2097 = vmul.f32 %v2095, 0.5
        %v2098 = vpack.c.bf16 %v2096, %v2096
        %v2099 = vpack.c.bf16 %v2097, %v2097
        %v2100 = vld [vmem:[#allocation8] sm:$0xf]
        %v2101 = vld [vmem:[#allocation8 + $0x4] sm:$0xf]
        %v2102 = vld [vmem:[#allocation8 + $0x8] sm:$0xf]
        %v2103 = vld [vmem:[#allocation8 + $0xc] sm:$0xf]
        %v2104 = vld [vmem:[#allocation8 + $0x10] sm:$0xf]
        %v2105 = vld [vmem:[#allocation8 + $0x14] sm:$0xf]
        %v2106 = vld [vmem:[#allocation8 + $0x18] sm:$0xf]
        %v2107 = vld [vmem:[#allocation8 + $0x1c] sm:$0xf]
        %v2108 = vld [vmem:[#allocation8 + $0x20] sm:$0xf]
        %v2109 = vld [vmem:[#allocation8 + $0x24] sm:$0xf]
        %v2110 = vld [vmem:[#allocation8 + $0x28] sm:$0xf]
        %v2111 = vld [vmem:[#allocation8 + $0x2c] sm:$0xf]
        %v2112 = vld [vmem:[#allocation8 + $0x30] sm:$0xf]
        %v2113 = vld [vmem:[#allocation8 + $0x34] sm:$0xf]
        %v2114 = vld [vmem:[#allocation8 + $0x38] sm:$0xf]
        %v2115 = vld [vmem:[#allocation8 + $0x3c] sm:$0xf]
        %v2116 = vld [vmem:[#allocation8 + $0x40] sm:$0xf]
        %v2117 = vld [vmem:[#allocation8 + $0x44] sm:$0xf]
        %v2118 = vld [vmem:[#allocation8 + $0x48] sm:$0xf]
        %v2119 = vld [vmem:[#allocation8 + $0x4c] sm:$0xf]
        %v2120 = vld [vmem:[#allocation8 + $0x50] sm:$0xf]
        %v2121 = vld [vmem:[#allocation8 + $0x54] sm:$0xf]
        %v2122 = vld [vmem:[#allocation8 + $0x58] sm:$0xf]
        %v2123 = vld [vmem:[#allocation8 + $0x5c] sm:$0xf]
        %v2124 = vld [vmem:[#allocation8 + $0x60] sm:$0xf]
        %v2125 = vld [vmem:[#allocation8 + $0x64] sm:$0xf]
        %v2126 = vld [vmem:[#allocation8 + $0x68] sm:$0xf]
        %v2127 = vld [vmem:[#allocation8 + $0x6c] sm:$0xf]
        %v2128 = vld [vmem:[#allocation8 + $0x70] sm:$0xf]
        %v2129 = vld [vmem:[#allocation8 + $0x74] sm:$0xf]
        %v2130 = vld [vmem:[#allocation8 + $0x78] sm:$0xf]
        %v2131 = vld [vmem:[#allocation8 + $0x7c] sm:$0xf]
        %v2132 = vld [vmem:[%s6] sm:$0x1]
        %v2134 = vlaneseq
        %v2135 = vshrl.u32 %v2134, 7
        %v2136 = vsub.s32 0, %v2135
        %v2137 = vrot.slane %v2132, %v2136
        %v2171 = vunpack.c.l.b16 %v2100
        %v2172 = vunpack.c.l.b16 %v2101
        %v2173 = vunpack.c.l.b16 %v2102
        %v2174 = vunpack.c.l.b16 %v2103
        %v2175 = vunpack.c.l.b16 %v2104
        %v2176 = vunpack.c.l.b16 %v2105
        %v2177 = vunpack.c.l.b16 %v2106
        %v2178 = vunpack.c.l.b16 %v2107
        %v2179 = vunpack.c.l.b16 %v2108
        %v2180 = vunpack.c.l.b16 %v2109
        %v2181 = vunpack.c.l.b16 %v2110
        %v2182 = vunpack.c.l.b16 %v2111
        %v2183 = vunpack.c.l.b16 %v2112
        %v2184 = vunpack.c.l.b16 %v2113
        %v2185 = vunpack.c.l.b16 %v2114
        %v2186 = vunpack.c.l.b16 %v2115
        %v2187 = vunpack.c.l.b16 %v2116
        %v2188 = vunpack.c.l.b16 %v2117
        %v2189 = vunpack.c.l.b16 %v2118
        %v2190 = vunpack.c.l.b16 %v2119
        %v2191 = vunpack.c.l.b16 %v2120
        %v2192 = vunpack.c.l.b16 %v2121
        %v2193 = vunpack.c.l.b16 %v2122
        %v2194 = vunpack.c.l.b16 %v2123
        %v2195 = vunpack.c.l.b16 %v2124
        %v2196 = vunpack.c.l.b16 %v2125
        %v2197 = vunpack.c.l.b16 %v2126
        %v2198 = vunpack.c.l.b16 %v2127
        %v2199 = vunpack.c.l.b16 %v2128
        %v2200 = vunpack.c.l.b16 %v2129
        %v2201 = vunpack.c.l.b16 %v2130
        %v2202 = vunpack.c.l.b16 %v2131
        %v2203 = vpack.c.b16 %v2172, %v2171
        %v2204 = vpack.c.b16 %v2174, %v2173
        %v2205 = vpack.c.b16 %v2176, %v2175
        %v2206 = vpack.c.b16 %v2178, %v2177
        %v2207 = vpack.c.b16 %v2180, %v2179
        %v2208 = vpack.c.b16 %v2182, %v2181
        %v2209 = vpack.c.b16 %v2184, %v2183
        %v2210 = vpack.c.b16 %v2186, %v2185
        %v2211 = vpack.c.b16 %v2188, %v2187
        %v2212 = vpack.c.b16 %v2190, %v2189
        %v2213 = vpack.c.b16 %v2192, %v2191
        %v2214 = vpack.c.b16 %v2194, %v2193
        %v2215 = vpack.c.b16 %v2196, %v2195
        %v2216 = vpack.c.b16 %v2198, %v2197
        %v2217 = vpack.c.b16 %v2200, %v2199
        %v2218 = vpack.c.b16 %v2202, %v2201
        %2235 = vmatprep.subr.bf16.mxu0 0
        %2236 = vmatpush1.bf16.msra.mxu0 %v2203
        %2237 = vmatprep.subr.bf16.mxu0 0
        %2238 = vmatpush1.bf16.msra.mxu0 %v2204
        %2239 = vmatprep.subr.bf16.mxu0 0
        %2240 = vmatpush1.bf16.msra.mxu0 %v2205
        %2241 = vmatprep.subr.bf16.mxu0 0
        %2242 = vmatpush1.bf16.msra.mxu0 %v2206
        %2243 = vmatprep.subr.bf16.mxu0 0
        %2244 = vmatpush1.bf16.msra.mxu0 %v2207
        %2245 = vmatprep.subr.bf16.mxu0 0
        %2246 = vmatpush1.bf16.msra.mxu0 %v2208
        %2247 = vmatprep.subr.bf16.mxu0 0
        %2248 = vmatpush1.bf16.msra.mxu0 %v2209
        %2249 = vmatprep.subr.bf16.mxu0 0
        %2250 = vmatpush1.bf16.msra.mxu0 %v2210
        %2251 = vmatprep.subr.bf16.mxu0 0
        %2252 = vmatpush1.bf16.msra.mxu0 %v2211
        %2253 = vmatprep.subr.bf16.mxu0 0
        %2254 = vmatpush1.bf16.msra.mxu0 %v2212
        %2255 = vmatprep.subr.bf16.mxu0 0
        %2256 = vmatpush1.bf16.msra.mxu0 %v2213
        %2257 = vmatprep.subr.bf16.mxu0 0
        %2258 = vmatpush1.bf16.msra.mxu0 %v2214
        %2259 = vmatprep.subr.bf16.mxu0 0
        %2260 = vmatpush1.bf16.msra.mxu0 %v2215
        %2261 = vmatprep.subr.bf16.mxu0 0
        %2262 = vmatpush1.bf16.msra.mxu0 %v2216
        %2263 = vmatprep.subr.bf16.mxu0 0
        %2264 = vmatpush1.bf16.msra.mxu0 %v2217
        %2265 = vmatprep.subr.bf16.mxu0 0
        %2266 = vmatpush1.bf16.msra.mxu0 %v2218
        %2267 = vmatprep.mubr.bf16.mxu0 %v2099
        %2268 = vmatmul.mubr.bf16.gmra.mrb[0].mxu0 %v2098
        %v2269 = vpop.f32.mrb[0].mxu0
        %v2270 = vadd.f32 %v2137, %v2269
        %v2271 = vpop.f32.mrb[0].mxu0
        %v2272 = vpop.f32.mrb[0].mxu0
        %v2273 = vpop.f32.mrb[0].mxu0
        %2274 = vdwg.mxu0
        %2275 = vmax.xlane.f32.xlu0 %v2270
        %v2276 = vpop.xlane.xlu0 %2275
        %v2277 = vsub.f32 %v2270, %v2276
        %v2278 = vmul.f32 %v2277, 1.442695
        %v2279 = vpow.pop %v2278
        %2280 = vadd.xlane.f32.xlu0 %v2279
        %v2281 = vpop.xlane.xlu0 %2280
        %v2282 = vrcp.pop %v2281
        %v2283 = vmul.f32 %v2279, %v2282
        %2284 = vst [vmem:[%s338] sm:$0xff] %v2283
        %s2285 = sand.u32 %s186, 1
        %s2286 = scalar_lea.sflag [#allocation4], %s2285
        %s2287 = sand.u32 %s186, 1
        %s2288 = smul.addr %s2287, 8
        %s2289 = scalar_lea.vmem [#allocation10], %s2288
        // Predicated region
        $region65: #{tpu_custom_call.1} parent=47 // pred_check
          %p2290 = pneg %p196
        $region66: #{tpu_custom_call.1} parent=47 // pred_check_branch
          %2292 = sbr.rel (%p2290) target = $region68
        $region67: #{tpu_custom_call.1} parent=47 // pred_region
          %s2294 = ssub.s32 128, 128
          %2295 = vsyncadd %s2286, %s2294
          %s2296 = smul.addr %s26, 128
          %s2297 = scalar_lea.hbm %s7, %s2296
          %s2299 = sshll.u32 %s2289, 4
          %s2300 = int_to_ptr.vmem [resolvable:$true] %s2299
          %2302 = dma.vmem_to_hbm [thread:$0]  %s2300, 128, %s2297, %s2286
        $region68: #{tpu_custom_call.1} parent=47 // pred_fallthru
          _
      $region48: #{tpu_custom_call.1} parent=5 // pred_fallthru
        _
      %p2303 = scmp.le.s32.totalorder 2, %s21
      // Predicated region
      $region69: #{tpu_custom_call.1} parent=5 // pred_check
        %p2304 = pneg %p2303
      $region70: #{tpu_custom_call.1} parent=5 // pred_check_branch
        %2306 = sbr.rel (%p2304) target = $region72
      $region71: #{tpu_custom_call.1} parent=5 // pred_region
        %s2307 = ssub.s32 %s21, 2
        // Predicated region
        $region73: #{tpu_custom_call.1} parent=71 // pred_check
          %p2308 = pneg %p202
        $region74: #{tpu_custom_call.1} parent=71 // pred_check_branch
          %2310 = sbr.rel (%p2308) target = $region76
        $region75: #{tpu_custom_call.1} parent=71 // pred_region
          %s2311 = sand.u32 %s187, 1
          %s2312 = scalar_lea.sflag [#allocation4], %s2311
          %s2313 = sand.u32 %s187, 1
          %s2314 = smul.addr %s2313, 8
          %s2315 = scalar_lea.vmem [#allocation10], %s2314
          %2316 = dma.done %s2312, 128
        $region76: #{tpu_custom_call.1} parent=71 // pred_fallthru
          _
      $region72: #{tpu_custom_call.1} parent=5 // pred_fallthru
        _
    $region6: #{tpu_custom_call.1} parent=1 // loop_footer
      %s25 = sadd.s32 1, %s21
    $region7: #{tpu_custom_call.1} parent=1 // loop_footer_branch
      %20 = sbr.rel target = $region3
    $region8: #{tpu_custom_call.1} parent=1 // loop_exit
      _
    %2317 = vsyncpa [#allocation3], 1
    %s2318 = scalar_lea.sflag [#allocation3], 1
    %2319 = vsyncpa %s2318, 1
    %2320 = vsyncpa [#allocation6], 1
    %2321 = vsyncpa [#allocation9], 1
    %2322 = vsyncpa [#allocation4], 1
    %s2323 = scalar_lea.sflag [#allocation4], 1
    %2324 = vsyncpa %s2323, 1

</llo_original>
